<compile_context>
chip_gen: v7x
topology: tpu7x:2x2x1
jax: 0.10.0
libtpu: 0.0.40
codegen_flags: <defaults>
</compile_context>

<pallas_src>
import jax
import jax.numpy as jnp
from jax.experimental import pallas as pl
from jax.experimental.pallas import tpu as pltpu


def _leaky_relu(x, slope=0.1):
    return jnp.where(x > 0, x, slope * x)


def _make_kernel(B, Bpad, M, hidden_out_dims):
    """Fused 5-layer MLP + Conv1d(k=1) merge.

    hidden_out_dims: output dims of the 4 activated layers (bias-offset table
    into the concatenated bias buffer is baked in as static Python ints).
    """
    offs = [0]
    for d in hidden_out_dims:
        offs.append(offs[-1] + d)

    def kernel(x_ref, convw_ref, bcat_ref, bfinal_ref,
               w1, w2, w3, w4, w5, out_ref):
        h = x_ref[...]                                     # (Bpad, Din) bf16
        # Layers 1..4: bf16 operands on the MXU, f32 accumulate, f32 bias+act.
        for i, w_ref in enumerate((w1, w2, w3, w4)):
            b = bcat_ref[:, offs[i]:offs[i + 1]]           # (1, Ni) f32, static
            y = jnp.dot(h, w_ref[...], preferred_element_type=jnp.float32) + b
            h = _leaky_relu(y).astype(jnp.bfloat16)
        # h: (Bpad, 2F) bf16 = activated layer-4 output for all fused rows.

        # Conv1d(k=1, micro->1) merge hoisted before the last Linear.
        # Selection matrix built in-kernel:  S[b, r] = conv_w[m]  iff r == b*M+m.
        row = jax.lax.broadcasted_iota(jnp.int32, (B, Bpad), 1)
        base = jax.lax.broadcasted_iota(jnp.int32, (B, Bpad), 0) * M
        s = jnp.zeros((B, Bpad), jnp.float32)
        for m in range(M):                                  # M is tiny (3)
            s = s + jnp.where(row == base + m, convw_ref[m], 0.0)
        merged = jnp.dot(s.astype(jnp.bfloat16), h,
                         preferred_element_type=jnp.float32)   # (B, 2F) f32

        # Final Linear(2F -> F); bias already pre-fused as sum(conv_w)*b5+conv_b.
        out_ref[...] = (jnp.dot(merged.astype(jnp.bfloat16), w5[...],
                                preferred_element_type=jnp.float32)
                        + bfinal_ref[...])

    return kernel


def micro_coexistence_forward(x, params):
    """x: (B, micro_num, input_dim) float32 -> (B, single_out_dim) float32."""
    B, M, Din = x.shape
    Ws, bs = params["Ws"], params["bs"]
    conv_w, conv_b = params["conv_w"], params["conv_b"]
    F = Ws[-1].shape[1]
    hidden_out_dims = [w.shape[1] for w in Ws[:4]]

    # Fuse micro into batch (free reshape) and pad rows to a multiple of 16
    # (bf16 sublane packing).  Pad rows are zero-input and never selected.
    rows = B * M
    Bpad = ((rows + 15) // 16) * 16
    x2 = jnp.pad(x.reshape(rows, Din),
                 ((0, Bpad - rows), (0, 0))).astype(jnp.bfloat16)

    # Weights streamed in bf16; biases of the 4 activated layers concatenated
    # into one f32 buffer (one DMA descriptor instead of four tiny ones).
    Ws_bf = [w.astype(jnp.bfloat16) for w in Ws]
    b_cat = jnp.concatenate(bs[:4], axis=1)                   # (1, sum_N) f32
    # Final bias pre-fused with the conv merge: sum(conv_w)*b5 + conv_b.
    b_final = jnp.sum(conv_w) * bs[4] + conv_b[0]             # (1, F) f32

    vmem = pltpu.MemorySpace.VMEM
    smem = pltpu.MemorySpace.SMEM
    in_specs = (
        [pl.BlockSpec(memory_space=vmem),     # x2      (Bpad, Din) bf16
         pl.BlockSpec(memory_space=smem),     # conv_w  (M,)        f32
         pl.BlockSpec(memory_space=vmem),     # b_cat   (1, sum_N)  f32
         pl.BlockSpec(memory_space=vmem)]     # b_final (1, F)      f32
        + [pl.BlockSpec(memory_space=vmem) for _ in Ws_bf])   # W1..W5 bf16

    # Actual footprint + headroom; cap well under v7x's 64 MiB physical VMEM.
    weight_bytes = sum(int(w.size) * 2 for w in Ws_bf)
    in_bytes = (int(x2.size) * 2 + int(b_cat.size) * 4 + int(b_final.size) * 4
                + int(conv_w.size) * 4 + weight_bytes)
    out_bytes = B * F * 4
    vmem_limit = min(max(int(1.5 * (in_bytes + out_bytes)) + (4 << 20),
                         16 << 20),
                     48 << 20)

    # Advisory cost: this call is dominated by weight HBM bytes.
    flops = (2 * Bpad * sum(w.shape[0] * w.shape[1] for w in Ws[:4])
             + 2 * B * Bpad * Ws[4].shape[0]
             + 2 * B * Ws[4].shape[0] * Ws[4].shape[1])
    cost = pl.CostEstimate(flops=flops, transcendentals=0,
                           bytes_accessed=in_bytes + out_bytes)

    kernel = _make_kernel(B, Bpad, M, hidden_out_dims)

    out = pl.pallas_call(
        kernel,
        out_shape=jax.ShapeDtypeStruct((B, F), jnp.float32),
        in_specs=in_specs,
        out_specs=pl.BlockSpec(memory_space=vmem),
        compiler_params=pltpu.CompilerParams(vmem_limit_bytes=vmem_limit),
        cost_estimate=cost,
    )(x2, conv_w, b_cat, b_final, *Ws_bf)
    return out


def reference_forward(x, params):
    """Plain-JAX reference of the PyTorch forward (eval mode), mirroring the
    kernel's bf16-operand / f32-accumulate matmuls."""
    Ws_bf = [w.astype(jnp.bfloat16) for w in params["Ws"]]
    bs = params["bs"]
    conv_w, conv_b = params["conv_w"], params["conv_b"]
    outs = []
    for m in range(x.shape[1]):
        h = x[:, m, :]
        for i in range(5):
            y = jnp.dot(h.astype(jnp.bfloat16), Ws_bf[i],
                        preferred_element_type=jnp.float32) + bs[i]
            h = _leaky_relu(y) if i < 4 else y
        outs.append(h)
    stacked = jnp.stack(outs, axis=1)                         # (B, M, F)
    return jnp.einsum("bmf,m->bf", stacked, conv_w) + conv_b[0]


def init_params(key, input_dim, hidden_dims, single_out_dim, micro_num):
    """Deterministic PyTorch-style U(-1/sqrt(fan_in), 1/sqrt(fan_in)) init."""
    dims = [input_dim] + list(hidden_dims) + [2 * single_out_dim, single_out_dim]
    Ws, bs = [], []
    for i in range(len(dims) - 1):
        key, kw, kb = jax.random.split(key, 3)
        bound = 1.0 / jnp.sqrt(dims[i])
        Ws.append(jax.random.uniform(kw, (dims[i], dims[i + 1]), jnp.float32,
                                     -bound, bound))
        bs.append(jax.random.uniform(kb, (1, dims[i + 1]), jnp.float32,
                                     -bound, bound))
    key, kcw, kcb = jax.random.split(key, 3)
    cbound = 1.0 / jnp.sqrt(micro_num)
    conv_w = jax.random.uniform(kcw, (micro_num,), jnp.float32, -cbound, cbound)
    conv_b = jax.random.uniform(kcb, (1,), jnp.float32, -cbound, cbound)
    return {"Ws": Ws, "bs": bs, "conv_w": conv_w, "conv_b": conv_b}


if __name__ == "__main__":
    # Small shapes consistent with the module (scaled-down hidden sizes).
    B = 8            # batch
    micro_num = 3    # community_size
    input_dim = 512
    hidden_dims = (512, 256, 256)   # stands in for (4096, 2048, 1024)
    single_out_dim = 128

    params = init_params(jax.random.PRNGKey(1), input_dim, hidden_dims,
                         single_out_dim, micro_num)

    x = jax.random.normal(jax.random.PRNGKey(0), (B, micro_num, input_dim),
                          dtype=jnp.float32)

    out = micro_coexistence_forward(x, params)
    out = jax.block_until_ready(out)

    ref = reference_forward(x, params)
    assert out.shape == (B, single_out_dim)
    assert jnp.allclose(out, ref, rtol=1e-2, atol=1e-2), \
        f"mismatch: max abs err {jnp.max(jnp.abs(out - ref))}"

    print("KERNEL_OK")
</pallas_src>

<mosaic_0001>
module attributes {stable_mosaic.version = 11 : i64} {
  func.func @kernel(%arg0: memref<32x512xbf16, #tpu.memory_space<vmem>>, %arg1: memref<3xf32, #tpu.memory_space<smem>>, %arg2: memref<1x1280xf32, #tpu.memory_space<vmem>>, %arg3: memref<1x128xf32, #tpu.memory_space<vmem>>, %arg4: memref<512x512xbf16, #tpu.memory_space<vmem>>, %arg5: memref<512x256xbf16, #tpu.memory_space<vmem>>, %arg6: memref<256x256xbf16, #tpu.memory_space<vmem>>, %arg7: memref<256x256xbf16, #tpu.memory_space<vmem>>, %arg8: memref<256x128xbf16, #tpu.memory_space<vmem>>, %arg9: memref<8x128xf32, #tpu.memory_space<vmem>>) attributes {dimension_semantics = [], scalar_prefetch = 0 : i64, scratch_operands = 0 : i64, tpu.core_type = #tpu.core_type<tc>} {
    %c0 = arith.constant 0 : index
    %c0_0 = arith.constant 0 : index
    %0 = vector.load %arg0[%c0, %c0_0] : memref<32x512xbf16, #tpu.memory_space<vmem>>, vector<32x512xbf16>
    %c0_1 = arith.constant 0 : index
    %c0_2 = arith.constant 0 : index
    %1 = vector.load %arg2[%c0_1, %c0_2] : memref<1x1280xf32, #tpu.memory_space<vmem>>, vector<1x512xf32>
    %c0_3 = arith.constant 0 : index
    %c0_4 = arith.constant 0 : index
    %2 = vector.load %arg4[%c0_3, %c0_4] : memref<512x512xbf16, #tpu.memory_space<vmem>>, vector<512x512xbf16>
    %cst = arith.constant dense<0.000000e+00> : vector<32x512xf32>
    %3 = tpu.matmul %0, %2, %cst {dimension_numbers = #tpu.dot_dimension_numbers<[1], [0], [0], [1], [0, 0, 1, 1], [], []>} : vector<32x512xbf16>, vector<512x512xbf16>, vector<32x512xf32> -> vector<32x512xf32>
    %4 = vector.broadcast %1 : vector<1x512xf32> to vector<32x512xf32>
    %5 = arith.addf %3, %4 : vector<32x512xf32>
    %cst_5 = arith.constant 0.000000e+00 : f32
    %6 = vector.broadcast %cst_5 : f32 to vector<32x512xf32>
    %7 = arith.cmpf ogt, %5, %6 : vector<32x512xf32>
    %cst_6 = arith.constant 1.000000e-01 : f32
    %8 = vector.broadcast %cst_6 : f32 to vector<32x512xf32>
    %9 = arith.mulf %8, %5 : vector<32x512xf32>
    %10 = arith.select %7, %5, %9 : vector<32x512xi1>, vector<32x512xf32>
    %11 = arith.truncf %10 : vector<32x512xf32> to vector<32x512xbf16>
    %c0_7 = arith.constant 0 : index
    %c512 = arith.constant 512 : index
    %12 = vector.load %arg2[%c0_7, %c512] : memref<1x1280xf32, #tpu.memory_space<vmem>>, vector<1x256xf32>
    %c0_8 = arith.constant 0 : index
    %c0_9 = arith.constant 0 : index
    %13 = vector.load %arg5[%c0_8, %c0_9] : memref<512x256xbf16, #tpu.memory_space<vmem>>, vector<512x256xbf16>
    %cst_10 = arith.constant dense<0.000000e+00> : vector<32x256xf32>
    %14 = tpu.matmul %11, %13, %cst_10 {dimension_numbers = #tpu.dot_dimension_numbers<[1], [0], [0], [1], [0, 0, 1, 1], [], []>} : vector<32x512xbf16>, vector<512x256xbf16>, vector<32x256xf32> -> vector<32x256xf32>
    %15 = vector.broadcast %12 : vector<1x256xf32> to vector<32x256xf32>
    %16 = arith.addf %14, %15 : vector<32x256xf32>
    %cst_11 = arith.constant 0.000000e+00 : f32
    %17 = vector.broadcast %cst_11 : f32 to vector<32x256xf32>
    %18 = arith.cmpf ogt, %16, %17 : vector<32x256xf32>
    %cst_12 = arith.constant 1.000000e-01 : f32
    %19 = vector.broadcast %cst_12 : f32 to vector<32x256xf32>
    %20 = arith.mulf %19, %16 : vector<32x256xf32>
    %21 = arith.select %18, %16, %20 : vector<32x256xi1>, vector<32x256xf32>
    %22 = arith.truncf %21 : vector<32x256xf32> to vector<32x256xbf16>
    %c0_13 = arith.constant 0 : index
    %c768 = arith.constant 768 : index
    %23 = vector.load %arg2[%c0_13, %c768] : memref<1x1280xf32, #tpu.memory_space<vmem>>, vector<1x256xf32>
    %c0_14 = arith.constant 0 : index
    %c0_15 = arith.constant 0 : index
    %24 = vector.load %arg6[%c0_14, %c0_15] : memref<256x256xbf16, #tpu.memory_space<vmem>>, vector<256x256xbf16>
    %cst_16 = arith.constant dense<0.000000e+00> : vector<32x256xf32>
    %25 = tpu.matmul %22, %24, %cst_16 {dimension_numbers = #tpu.dot_dimension_numbers<[1], [0], [0], [1], [0, 0, 1, 1], [], []>} : vector<32x256xbf16>, vector<256x256xbf16>, vector<32x256xf32> -> vector<32x256xf32>
    %26 = vector.broadcast %23 : vector<1x256xf32> to vector<32x256xf32>
    %27 = arith.addf %25, %26 : vector<32x256xf32>
    %cst_17 = arith.constant 0.000000e+00 : f32
    %28 = vector.broadcast %cst_17 : f32 to vector<32x256xf32>
    %29 = arith.cmpf ogt, %27, %28 : vector<32x256xf32>
    %cst_18 = arith.constant 1.000000e-01 : f32
    %30 = vector.broadcast %cst_18 : f32 to vector<32x256xf32>
    %31 = arith.mulf %30, %27 : vector<32x256xf32>
    %32 = arith.select %29, %27, %31 : vector<32x256xi1>, vector<32x256xf32>
    %33 = arith.truncf %32 : vector<32x256xf32> to vector<32x256xbf16>
    %c0_19 = arith.constant 0 : index
    %c1024 = arith.constant 1024 : index
    %34 = vector.load %arg2[%c0_19, %c1024] : memref<1x1280xf32, #tpu.memory_space<vmem>>, vector<1x256xf32>
    %c0_20 = arith.constant 0 : index
    %c0_21 = arith.constant 0 : index
    %35 = vector.load %arg7[%c0_20, %c0_21] : memref<256x256xbf16, #tpu.memory_space<vmem>>, vector<256x256xbf16>
    %cst_22 = arith.constant dense<0.000000e+00> : vector<32x256xf32>
    %36 = tpu.matmul %33, %35, %cst_22 {dimension_numbers = #tpu.dot_dimension_numbers<[1], [0], [0], [1], [0, 0, 1, 1], [], []>} : vector<32x256xbf16>, vector<256x256xbf16>, vector<32x256xf32> -> vector<32x256xf32>
    %37 = vector.broadcast %34 : vector<1x256xf32> to vector<32x256xf32>
    %38 = arith.addf %36, %37 : vector<32x256xf32>
    %cst_23 = arith.constant 0.000000e+00 : f32
    %39 = vector.broadcast %cst_23 : f32 to vector<32x256xf32>
    %40 = arith.cmpf ogt, %38, %39 : vector<32x256xf32>
    %cst_24 = arith.constant 1.000000e-01 : f32
    %41 = vector.broadcast %cst_24 : f32 to vector<32x256xf32>
    %42 = arith.mulf %41, %38 : vector<32x256xf32>
    %43 = arith.select %40, %38, %42 : vector<32x256xi1>, vector<32x256xf32>
    %44 = arith.truncf %43 : vector<32x256xf32> to vector<32x256xbf16>
    %45 = tpu.iota {dimensions = array<i32: 1>} : vector<8x32xi32>
    %46 = tpu.iota {dimensions = array<i32: 0>} : vector<8x32xi32>
    %c3_i32 = arith.constant 3 : i32
    %47 = vector.broadcast %c3_i32 : i32 to vector<8x32xi32>
    %48 = arith.muli %46, %47 : vector<8x32xi32>
    %cst_25 = arith.constant 0.000000e+00 : f32
    %49 = vector.broadcast %cst_25 : f32 to vector<8x32xf32>
    %c0_i32 = arith.constant 0 : i32
    %50 = vector.broadcast %c0_i32 : i32 to vector<8x32xi32>
    %51 = arith.addi %48, %50 : vector<8x32xi32>
    %52 = arith.cmpi eq, %45, %51 : vector<8x32xi32>
    %c0_26 = arith.constant 0 : index
    %53 = memref.load %arg1[%c0_26] : memref<3xf32, #tpu.memory_space<smem>>
    %cst_27 = arith.constant 0.000000e+00 : f32
    %54 = vector.broadcast %53 : f32 to vector<8x32xf32>
    %55 = vector.broadcast %cst_27 : f32 to vector<8x32xf32>
    %56 = arith.select %52, %54, %55 : vector<8x32xi1>, vector<8x32xf32>
    %57 = arith.addf %49, %56 : vector<8x32xf32>
    %c1_i32 = arith.constant 1 : i32
    %58 = vector.broadcast %c1_i32 : i32 to vector<8x32xi32>
    %59 = arith.addi %48, %58 : vector<8x32xi32>
    %60 = arith.cmpi eq, %45, %59 : vector<8x32xi32>
    %c1 = arith.constant 1 : index
    %61 = memref.load %arg1[%c1] : memref<3xf32, #tpu.memory_space<smem>>
    %cst_28 = arith.constant 0.000000e+00 : f32
    %62 = vector.broadcast %61 : f32 to vector<8x32xf32>
    %63 = vector.broadcast %cst_28 : f32 to vector<8x32xf32>
    %64 = arith.select %60, %62, %63 : vector<8x32xi1>, vector<8x32xf32>
    %65 = arith.addf %57, %64 : vector<8x32xf32>
    %c2_i32 = arith.constant 2 : i32
    %66 = vector.broadcast %c2_i32 : i32 to vector<8x32xi32>
    %67 = arith.addi %48, %66 : vector<8x32xi32>
    %68 = arith.cmpi eq, %45, %67 : vector<8x32xi32>
    %c2 = arith.constant 2 : index
    %69 = memref.load %arg1[%c2] : memref<3xf32, #tpu.memory_space<smem>>
    %cst_29 = arith.constant 0.000000e+00 : f32
    %70 = vector.broadcast %69 : f32 to vector<8x32xf32>
    %71 = vector.broadcast %cst_29 : f32 to vector<8x32xf32>
    %72 = arith.select %68, %70, %71 : vector<8x32xi1>, vector<8x32xf32>
    %73 = arith.addf %65, %72 : vector<8x32xf32>
    %74 = arith.truncf %73 : vector<8x32xf32> to vector<8x32xbf16>
    %cst_30 = arith.constant dense<0.000000e+00> : vector<8x256xf32>
    %75 = tpu.matmul %74, %44, %cst_30 {dimension_numbers = #tpu.dot_dimension_numbers<[1], [0], [0], [1], [0, 0, 1, 1], [], []>} : vector<8x32xbf16>, vector<32x256xbf16>, vector<8x256xf32> -> vector<8x256xf32>
    %76 = arith.truncf %75 : vector<8x256xf32> to vector<8x256xbf16>
    %c0_31 = arith.constant 0 : index
    %c0_32 = arith.constant 0 : index
    %77 = vector.load %arg8[%c0_31, %c0_32] : memref<256x128xbf16, #tpu.memory_space<vmem>>, vector<256x128xbf16>
    %cst_33 = arith.constant dense<0.000000e+00> : vector<8x128xf32>
    %78 = tpu.matmul %76, %77, %cst_33 {dimension_numbers = #tpu.dot_dimension_numbers<[1], [0], [0], [1], [0, 0, 1, 1], [], []>} : vector<8x256xbf16>, vector<256x128xbf16>, vector<8x128xf32> -> vector<8x128xf32>
    %c0_34 = arith.constant 0 : index
    %c0_35 = arith.constant 0 : index
    %79 = vector.load %arg3[%c0_34, %c0_35] : memref<1x128xf32, #tpu.memory_space<vmem>>, vector<1x128xf32>
    %80 = vector.broadcast %79 : vector<1x128xf32> to vector<8x128xf32>
    %81 = arith.addf %78, %80 : vector<8x128xf32>
    %c0_36 = arith.constant 0 : index
    %c0_37 = arith.constant 0 : index
    %82 = vector.load %arg9[%c0_36, %c0_37] : memref<8x128xf32, #tpu.memory_space<vmem>>, vector<8x128xf32>
    tpu.vector_store %arg9[%c0_36, %c0_37], %81 {strides = array<i32>} : memref<8x128xf32, #tpu.memory_space<vmem>>, vector<8x128xf32>,
    return
  }
}

</mosaic_0001>

<llo_original>
// kernel: tpu_custom_call.1
$region0: #{tpu_custom_call.1}
  #allocation0 [shape = 'u32[]', space=smem, size = 0x4, offset = 0x4, fixed_abs, tag = 'smem constant byte address 0x4 - core index']
  #allocation1 [shape = 'u32[144,128]{1,0:T(1,128)}', space=vmem, size = 0x12000, scoped, tag = 'internal scratch']
  %s0 = inlined_call_operand.hbm [shape: bf16[32,512], index: 0, kind: input, shape index: {}]
  %s1 = inlined_call_operand.vmem [shape: f32[3], index: 1, kind: input, shape index: {}]
  %s2 = inlined_call_operand.hbm [shape: f32[1,1280], index: 2, kind: input, shape index: {}]
  %s3 = inlined_call_operand.vmem [shape: f32[1,128], index: 3, kind: input, shape index: {}]
  %s4 = inlined_call_operand.hbm [shape: bf16[512,512], index: 4, kind: input, shape index: {}]
  %s5 = inlined_call_operand.hbm [shape: bf16[512,256], index: 5, kind: input, shape index: {}]
  %s6 = inlined_call_operand.hbm [shape: bf16[256,256], index: 6, kind: input, shape index: {}]
  %s7 = inlined_call_operand.hbm [shape: bf16[256,256], index: 7, kind: input, shape index: {}]
  %s8 = inlined_call_operand.hbm [shape: bf16[256,128], index: 8, kind: input, shape index: {}]
  %s9 = inlined_call_operand.hbm [shape: f32[8,128], index: 9, kind: output, shape index: {}]
  %s10 = sld [smem:[#allocation0]]
  $region78: #{tpu_custom_call.1} parent=0
    _
  %s12 = ssub.s32 1, %s10
  %s13 = scalar_select 0, %s12, %s10
  $region1: #{tpu_custom_call.1} parent=0
    #allocation2 [shape = 'u8[32768]{0}', space=vmem, size = 0x8000, scoped, tag = 'input window, operand 0, single buffered']
    #allocation3 [shape = 's32[1]{0}', space=sflag, size = 0x4, scoped, tag = 'scoped memory for tpu_custom_call.1']
    #allocation4 [shape = 's32[1]{0}', space=sflag, size = 0x4, scoped, tag = 'scoped memory for tpu_custom_call.1']
    #allocation5 [shape = 's32[1]{0}', space=sflag, size = 0x4, scoped, tag = 'scoped memory for tpu_custom_call.1']
    #allocation6 [shape = 'u8[512]{0}', space=smem, size = 0x200, scoped, tag = 'input window, operand 1, single buffered']
    #allocation7 [shape = 'u8[5120]{0}', space=vmem, size = 0x1400, scoped, tag = 'input window, operand 2, single buffered']
    #allocation8 [shape = 's32[1]{0}', space=sflag, size = 0x4, scoped, tag = 'scoped memory for tpu_custom_call.1']
    #allocation9 [shape = 'u8[524288]{0}', space=vmem, size = 0x80000, scoped, tag = 'input window, operand 4, single buffered']
    #allocation10 [shape = 'u8[262144]{0}', space=vmem, size = 0x40000, scoped, tag = 'input window, operand 5, single buffered']
    #allocation11 [shape = 's32[1]{0}', space=sflag, size = 0x4, scoped, tag = 'scoped memory for tpu_custom_call.1']
    #allocation12 [shape = 'u8[131072]{0}', space=vmem, size = 0x20000, scoped, tag = 'input window, operand 6, single buffered']
    #allocation13 [shape = 'u8[131072]{0}', space=vmem, size = 0x20000, scoped, tag = 'input window, operand 7, single buffered']
    #allocation14 [shape = 's32[1]{0}', space=sflag, size = 0x4, scoped, tag = 'scoped memory for tpu_custom_call.1']
    #allocation15 [shape = 'u8[65536]{0}', space=vmem, size = 0x10000, scoped, tag = 'input window, operand 8, single buffered']
    #allocation16 [shape = 'u8[4096]{0}', space=vmem, size = 0x1000, scoped, tag = 'output window, operand 0, single buffered']
    %14 = vsyncpa [#allocation3], 0
    %15 = vsyncpa [#allocation5], 0
    %16 = vsyncpa [#allocation8], 0
    %17 = vsyncpa [#allocation11], 0
    %18 = vsyncpa [#allocation14], 0
    %19 = vsyncpa [#allocation4], 0
    // Predicated region
    $region2: #{tpu_custom_call.1} parent=1 // pred_check
      _
    $region3: #{tpu_custom_call.1} parent=1 // pred_check_branch
      %21 = sbr.rel (0) target = $region5
    $region4: #{tpu_custom_call.1} parent=1 // pred_region
      %s23 = ssub.s32 1024, 1024
      %24 = vsyncadd [#allocation3], %s23
      %s25 = sshll.u32 [#allocation2], 4
      %s26 = int_to_ptr.vmem [resolvable:$true] %s25
      %31 = dma.hbm_to_vmem [thread:$0]  %s0, 1024, %s26, [#allocation3], 256, 256, 16
    $region5: #{tpu_custom_call.1} parent=1 // pred_fallthru
      _
    // Predicated region
    $region6: #{tpu_custom_call.1} parent=1 // pred_check
      _
    $region7: #{tpu_custom_call.1} parent=1 // pred_check_branch
      %33 = sbr.rel (0) target = $region9
    $region8: #{tpu_custom_call.1} parent=1 // pred_region
      %s35 = ssub.s32 16, 16
      %36 = vsyncadd [#allocation5], %s35
      %s38 = sshll.u32 %s1, 4
      %s39 = int_to_ptr.vmem [resolvable:$true] %s38
      %41 = dma.vmem_to_smem %s39, 16, [#allocation6], [#allocation5]
    $region9: #{tpu_custom_call.1} parent=1 // pred_fallthru
      _
    // Predicated region
    $region10: #{tpu_custom_call.1} parent=1 // pred_check
      _
    $region11: #{tpu_custom_call.1} parent=1 // pred_check_branch
      %43 = sbr.rel (0) target = $region13
    $region12: #{tpu_custom_call.1} parent=1 // pred_region
      %s45 = ssub.s32 160, 160
      %46 = vsyncadd [#allocation8], %s45
      %s48 = sshll.u32 [#allocation7], 4
      %s49 = int_to_ptr.vmem [resolvable:$true] %s48
      %51 = dma.hbm_to_vmem [thread:$0]  %s2, 160, %s49, [#allocation8]
    $region13: #{tpu_custom_call.1} parent=1 // pred_fallthru
      _
    // Predicated region
    $region14: #{tpu_custom_call.1} parent=1 // pred_check
      _
    $region15: #{tpu_custom_call.1} parent=1 // pred_check_branch
      %53 = sbr.rel (0) target = $region17
    $region16: #{tpu_custom_call.1} parent=1 // pred_region
      _
    $region17: #{tpu_custom_call.1} parent=1 // pred_fallthru
      _
    // Predicated region
    $region18: #{tpu_custom_call.1} parent=1 // pred_check
      _
    $region19: #{tpu_custom_call.1} parent=1 // pred_check_branch
      %55 = sbr.rel (0) target = $region21
    $region20: #{tpu_custom_call.1} parent=1 // pred_region
      %s57 = ssub.s32 16384, 16384
      %58 = vsyncadd [#allocation8], %s57
      %s59 = sshll.u32 [#allocation9], 4
      %s60 = int_to_ptr.vmem [resolvable:$true] %s59
      %65 = dma.hbm_to_vmem [thread:$0]  %s4, 16384, %s60, [#allocation8], 256, 256, 16
    $region21: #{tpu_custom_call.1} parent=1 // pred_fallthru
      _
    // Predicated region
    $region22: #{tpu_custom_call.1} parent=1 // pred_check
      _
    $region23: #{tpu_custom_call.1} parent=1 // pred_check_branch
      %67 = sbr.rel (0) target = $region25
    $region24: #{tpu_custom_call.1} parent=1 // pred_region
      %s69 = ssub.s32 8192, 8192
      %70 = vsyncadd [#allocation11], %s69
      %s71 = sshll.u32 [#allocation10], 4
      %s72 = int_to_ptr.vmem [resolvable:$true] %s71
      %77 = dma.hbm_to_vmem [thread:$0]  %s5, 8192, %s72, [#allocation11], 128, 128, 8
    $region25: #{tpu_custom_call.1} parent=1 // pred_fallthru
      _
    // Predicated region
    $region26: #{tpu_custom_call.1} parent=1 // pred_check
      _
    $region27: #{tpu_custom_call.1} parent=1 // pred_check_branch
      %79 = sbr.rel (0) target = $region29
    $region28: #{tpu_custom_call.1} parent=1 // pred_region
      %s81 = ssub.s32 4096, 4096
      %82 = vsyncadd [#allocation11], %s81
      %s83 = sshll.u32 [#allocation12], 4
      %s84 = int_to_ptr.vmem [resolvable:$true] %s83
      %89 = dma.hbm_to_vmem [thread:$0]  %s6, 4096, %s84, [#allocation11], 128, 128, 8
    $region29: #{tpu_custom_call.1} parent=1 // pred_fallthru
      _
    // Predicated region
    $region30: #{tpu_custom_call.1} parent=1 // pred_check
      _
    $region31: #{tpu_custom_call.1} parent=1 // pred_check_branch
      %91 = sbr.rel (0) target = $region33
    $region32: #{tpu_custom_call.1} parent=1 // pred_region
      %s93 = ssub.s32 4096, 4096
      %94 = vsyncadd [#allocation14], %s93
      %s95 = sshll.u32 [#allocation13], 4
      %s96 = int_to_ptr.vmem [resolvable:$true] %s95
      %101 = dma.hbm_to_vmem [thread:$0]  %s7, 4096, %s96, [#allocation14], 128, 128, 8
    $region33: #{tpu_custom_call.1} parent=1 // pred_fallthru
      _
    // Predicated region
    $region34: #{tpu_custom_call.1} parent=1 // pred_check
      _
    $region35: #{tpu_custom_call.1} parent=1 // pred_check_branch
      %103 = sbr.rel (0) target = $region37
    $region36: #{tpu_custom_call.1} parent=1 // pred_region
      %s105 = ssub.s32 2048, 2048
      %106 = vsyncadd [#allocation14], %s105
      %s107 = sshll.u32 [#allocation15], 4
      %s108 = int_to_ptr.vmem [resolvable:$true] %s107
      %113 = dma.hbm_to_vmem [thread:$0]  %s8, 2048, %s108, [#allocation14], 64, 64, 4
    $region37: #{tpu_custom_call.1} parent=1 // pred_fallthru
      _
    // Predicated region
    $region38: #{tpu_custom_call.1} parent=1 // pred_check
      _
    $region39: #{tpu_custom_call.1} parent=1 // pred_check_branch
      %115 = sbr.rel (0) target = $region41
    $region40: #{tpu_custom_call.1} parent=1 // pred_region
      %116 = dma.done [#allocation3], 1024
    $region41: #{tpu_custom_call.1} parent=1 // pred_fallthru
      _
    // Predicated region
    $region42: #{tpu_custom_call.1} parent=1 // pred_check
      _
    $region43: #{tpu_custom_call.1} parent=1 // pred_check_branch
      %118 = sbr.rel (0) target = $region45
    $region44: #{tpu_custom_call.1} parent=1 // pred_region
      %119 = dma.done [#allocation5], 16
    $region45: #{tpu_custom_call.1} parent=1 // pred_fallthru
      _
    // Predicated region
    $region46: #{tpu_custom_call.1} parent=1 // pred_check
      _
    $region47: #{tpu_custom_call.1} parent=1 // pred_check_branch
      %121 = sbr.rel (0) target = $region49
    $region48: #{tpu_custom_call.1} parent=1 // pred_region
      %122 = dma.done [#allocation8], 160
    $region49: #{tpu_custom_call.1} parent=1 // pred_fallthru
      _
    // Predicated region
    $region50: #{tpu_custom_call.1} parent=1 // pred_check
      _
    $region51: #{tpu_custom_call.1} parent=1 // pred_check_branch
      %124 = sbr.rel (0) target = $region53
    $region52: #{tpu_custom_call.1} parent=1 // pred_region
      %125 = dma.done [#allocation8], 16384
    $region53: #{tpu_custom_call.1} parent=1 // pred_fallthru
      _
    // Predicated region
    $region54: #{tpu_custom_call.1} parent=1 // pred_check
      _
    $region55: #{tpu_custom_call.1} parent=1 // pred_check_branch
      %127 = sbr.rel (0) target = $region57
    $region56: #{tpu_custom_call.1} parent=1 // pred_region
      %128 = dma.done [#allocation11], 8192
    $region57: #{tpu_custom_call.1} parent=1 // pred_fallthru
      _
    // Predicated region
    $region58: #{tpu_custom_call.1} parent=1 // pred_check
      _
    $region59: #{tpu_custom_call.1} parent=1 // pred_check_branch
      %130 = sbr.rel (0) target = $region61
    $region60: #{tpu_custom_call.1} parent=1 // pred_region
      %131 = dma.done [#allocation11], 4096
    $region61: #{tpu_custom_call.1} parent=1 // pred_fallthru
      _
    // Predicated region
    $region62: #{tpu_custom_call.1} parent=1 // pred_check
      _
    $region63: #{tpu_custom_call.1} parent=1 // pred_check_branch
      %133 = sbr.rel (0) target = $region65
    $region64: #{tpu_custom_call.1} parent=1 // pred_region
      %134 = dma.done [#allocation14], 4096
    $region65: #{tpu_custom_call.1} parent=1 // pred_fallthru
      _
    // Predicated region
    $region66: #{tpu_custom_call.1} parent=1 // pred_check
      _
    $region67: #{tpu_custom_call.1} parent=1 // pred_check_branch
      %136 = sbr.rel (0) target = $region69
    $region68: #{tpu_custom_call.1} parent=1 // pred_region
      %137 = dma.done [#allocation14], 2048
    $region69: #{tpu_custom_call.1} parent=1 // pred_fallthru
      _
    %138 = sfence
    %v140 = vld [vmem:[#allocation2] sm:$0xff]
    %v141 = vld [vmem:[#allocation2 + $0x8] sm:$0xff]
    %v142 = vld [vmem:[#allocation2 + $0x10] sm:$0xff]
    %v143 = vld [vmem:[#allocation2 + $0x18] sm:$0xff]
    %v144 = vld [vmem:[#allocation2 + $0x20] sm:$0xff]
    %v145 = vld [vmem:[#allocation2 + $0x28] sm:$0xff]
    %v146 = vld [vmem:[#allocation2 + $0x30] sm:$0xff]
    %v147 = vld [vmem:[#allocation2 + $0x38] sm:$0xff]
    %v148 = vld [vmem:[#allocation7] sm:$0xf]
    %v149 = vld [vmem:[#allocation9] sm:$0xff]
    %v150 = vld [vmem:[#allocation9 + $0x8] sm:$0xff]
    %v151 = vld [vmem:[#allocation9 + $0x10] sm:$0xff]
    %v152 = vld [vmem:[#allocation9 + $0x18] sm:$0xff]
    %v153 = vld [vmem:[#allocation9 + $0x20] sm:$0xff]
    %v154 = vld [vmem:[#allocation9 + $0x28] sm:$0xff]
    %v155 = vld [vmem:[#allocation9 + $0x30] sm:$0xff]
    %v156 = vld [vmem:[#allocation9 + $0x38] sm:$0xff]
    %v157 = vld [vmem:[#allocation9 + $0x40] sm:$0xff]
    %v158 = vld [vmem:[#allocation9 + $0x48] sm:$0xff]
    %v159 = vld [vmem:[#allocation9 + $0x50] sm:$0xff]
    %v160 = vld [vmem:[#allocation9 + $0x58] sm:$0xff]
    %v161 = vld [vmem:[#allocation9 + $0x60] sm:$0xff]
    %v162 = vld [vmem:[#allocation9 + $0x68] sm:$0xff]
    %v163 = vld [vmem:[#allocation9 + $0x70] sm:$0xff]
    %v164 = vld [vmem:[#allocation9 + $0x78] sm:$0xff]
    %v165 = vld [vmem:[#allocation9 + $0x80] sm:$0xff]
    %v166 = vld [vmem:[#allocation9 + $0x88] sm:$0xff]
    %v167 = vld [vmem:[#allocation9 + $0x90] sm:$0xff]
    %v168 = vld [vmem:[#allocation9 + $0x98] sm:$0xff]
    %v169 = vld [vmem:[#allocation9 + $0xa0] sm:$0xff]
    %v170 = vld [vmem:[#allocation9 + $0xa8] sm:$0xff]
    %v171 = vld [vmem:[#allocation9 + $0xb0] sm:$0xff]
    %v172 = vld [vmem:[#allocation9 + $0xb8] sm:$0xff]
    %v173 = vld [vmem:[#allocation9 + $0xc0] sm:$0xff]
    %v174 = vld [vmem:[#allocation9 + $0xc8] sm:$0xff]
    %v175 = vld [vmem:[#allocation9 + $0xd0] sm:$0xff]
    %v176 = vld [vmem:[#allocation9 + $0xd8] sm:$0xff]
    %v177 = vld [vmem:[#allocation9 + $0xe0] sm:$0xff]
    %v178 = vld [vmem:[#allocation9 + $0xe8] sm:$0xff]
    %v179 = vld [vmem:[#allocation9 + $0xf0] sm:$0xff]
    %v180 = vld [vmem:[#allocation9 + $0xf8] sm:$0xff]
    %v181 = vld [vmem:[#allocation9 + $0x100] sm:$0xff]
    %v182 = vld [vmem:[#allocation9 + $0x108] sm:$0xff]
    %v183 = vld [vmem:[#allocation9 + $0x110] sm:$0xff]
    %v184 = vld [vmem:[#allocation9 + $0x118] sm:$0xff]
    %v185 = vld [vmem:[#allocation9 + $0x120] sm:$0xff]
    %v186 = vld [vmem:[#allocation9 + $0x128] sm:$0xff]
    %v187 = vld [vmem:[#allocation9 + $0x130] sm:$0xff]
    %v188 = vld [vmem:[#allocation9 + $0x138] sm:$0xff]
    %v189 = vld [vmem:[#allocation9 + $0x140] sm:$0xff]
    %v190 = vld [vmem:[#allocation9 + $0x148] sm:$0xff]
    %v191 = vld [vmem:[#allocation9 + $0x150] sm:$0xff]
    %v192 = vld [vmem:[#allocation9 + $0x158] sm:$0xff]
    %v193 = vld [vmem:[#allocation9 + $0x160] sm:$0xff]
    %v194 = vld [vmem:[#allocation9 + $0x168] sm:$0xff]
    %v195 = vld [vmem:[#allocation9 + $0x170] sm:$0xff]
    %v196 = vld [vmem:[#allocation9 + $0x178] sm:$0xff]
    %v197 = vld [vmem:[#allocation9 + $0x180] sm:$0xff]
    %v198 = vld [vmem:[#allocation9 + $0x188] sm:$0xff]
    %v199 = vld [vmem:[#allocation9 + $0x190] sm:$0xff]
    %v200 = vld [vmem:[#allocation9 + $0x198] sm:$0xff]
    %v201 = vld [vmem:[#allocation9 + $0x1a0] sm:$0xff]
    %v202 = vld [vmem:[#allocation9 + $0x1a8] sm:$0xff]
    %v203 = vld [vmem:[#allocation9 + $0x1b0] sm:$0xff]
    %v204 = vld [vmem:[#allocation9 + $0x1b8] sm:$0xff]
    %v205 = vld [vmem:[#allocation9 + $0x1c0] sm:$0xff]
    %v206 = vld [vmem:[#allocation9 + $0x1c8] sm:$0xff]
    %v207 = vld [vmem:[#allocation9 + $0x1d0] sm:$0xff]
    %v208 = vld [vmem:[#allocation9 + $0x1d8] sm:$0xff]
    %v209 = vld [vmem:[#allocation9 + $0x1e0] sm:$0xff]
    %v210 = vld [vmem:[#allocation9 + $0x1e8] sm:$0xff]
    %v211 = vld [vmem:[#allocation9 + $0x1f0] sm:$0xff]
    %v212 = vld [vmem:[#allocation9 + $0x1f8] sm:$0xff]
    %v213 = vld [vmem:[#allocation9 + $0x200] sm:$0xff]
    %v214 = vld [vmem:[#allocation9 + $0x208] sm:$0xff]
    %v215 = vld [vmem:[#allocation9 + $0x210] sm:$0xff]
    %v216 = vld [vmem:[#allocation9 + $0x218] sm:$0xff]
    %v217 = vld [vmem:[#allocation9 + $0x220] sm:$0xff]
    %v218 = vld [vmem:[#allocation9 + $0x228] sm:$0xff]
    %v219 = vld [vmem:[#allocation9 + $0x230] sm:$0xff]
    %v220 = vld [vmem:[#allocation9 + $0x238] sm:$0xff]
    %v221 = vld [vmem:[#allocation9 + $0x240] sm:$0xff]
    %v222 = vld [vmem:[#allocation9 + $0x248] sm:$0xff]
    %v223 = vld [vmem:[#allocation9 + $0x250] sm:$0xff]
    %v224 = vld [vmem:[#allocation9 + $0x258] sm:$0xff]
    %v225 = vld [vmem:[#allocation9 + $0x260] sm:$0xff]
    %v226 = vld [vmem:[#allocation9 + $0x268] sm:$0xff]
    %v227 = vld [vmem:[#allocation9 + $0x270] sm:$0xff]
    %v228 = vld [vmem:[#allocation9 + $0x278] sm:$0xff]
    %v229 = vld [vmem:[#allocation9 + $0x280] sm:$0xff]
    %v230 = vld [vmem:[#allocation9 + $0x288] sm:$0xff]
    %v231 = vld [vmem:[#allocation9 + $0x290] sm:$0xff]
    %v232 = vld [vmem:[#allocation9 + $0x298] sm:$0xff]
    %v233 = vld [vmem:[#allocation9 + $0x2a0] sm:$0xff]
    %v234 = vld [vmem:[#allocation9 + $0x2a8] sm:$0xff]
    %v235 = vld [vmem:[#allocation9 + $0x2b0] sm:$0xff]
    %v236 = vld [vmem:[#allocation9 + $0x2b8] sm:$0xff]
    %v237 = vld [vmem:[#allocation9 + $0x2c0] sm:$0xff]
    %v238 = vld [vmem:[#allocation9 + $0x2c8] sm:$0xff]
    %v239 = vld [vmem:[#allocation9 + $0x2d0] sm:$0xff]
    %v240 = vld [vmem:[#allocation9 + $0x2d8] sm:$0xff]
    %v241 = vld [vmem:[#allocation9 + $0x2e0] sm:$0xff]
    %v242 = vld [vmem:[#allocation9 + $0x2e8] sm:$0xff]
    %v243 = vld [vmem:[#allocation9 + $0x2f0] sm:$0xff]
    %v244 = vld [vmem:[#allocation9 + $0x2f8] sm:$0xff]
    %v245 = vld [vmem:[#allocation9 + $0x300] sm:$0xff]
    %v246 = vld [vmem:[#allocation9 + $0x308] sm:$0xff]
    %v247 = vld [vmem:[#allocation9 + $0x310] sm:$0xff]
    %v248 = vld [vmem:[#allocation9 + $0x318] sm:$0xff]
    %v249 = vld [vmem:[#allocation9 + $0x320] sm:$0xff]
    %v250 = vld [vmem:[#allocation9 + $0x328] sm:$0xff]
    %v251 = vld [vmem:[#allocation9 + $0x330] sm:$0xff]
    %v252 = vld [vmem:[#allocation9 + $0x338] sm:$0xff]
    %v253 = vld [vmem:[#allocation9 + $0x340] sm:$0xff]
    %v254 = vld [vmem:[#allocation9 + $0x348] sm:$0xff]
    %v255 = vld [vmem:[#allocation9 + $0x350] sm:$0xff]
    %v256 = vld [vmem:[#allocation9 + $0x358] sm:$0xff]
    %v257 = vld [vmem:[#allocation9 + $0x360] sm:$0xff]
    %v258 = vld [vmem:[#allocation9 + $0x368] sm:$0xff]
    %v259 = vld [vmem:[#allocation9 + $0x370] sm:$0xff]
    %v260 = vld [vmem:[#allocation9 + $0x378] sm:$0xff]
    %v261 = vld [vmem:[#allocation9 + $0x380] sm:$0xff]
    %v262 = vld [vmem:[#allocation9 + $0x388] sm:$0xff]
    %v263 = vld [vmem:[#allocation9 + $0x390] sm:$0xff]
    %v264 = vld [vmem:[#allocation9 + $0x398] sm:$0xff]
    %v265 = vld [vmem:[#allocation9 + $0x3a0] sm:$0xff]
    %v266 = vld [vmem:[#allocation9 + $0x3a8] sm:$0xff]
    %v267 = vld [vmem:[#allocation9 + $0x3b0] sm:$0xff]
    %v268 = vld [vmem:[#allocation9 + $0x3b8] sm:$0xff]
    %v269 = vld [vmem:[#allocation9 + $0x3c0] sm:$0xff]
    %v270 = vld [vmem:[#allocation9 + $0x3c8] sm:$0xff]
    %v271 = vld [vmem:[#allocation9 + $0x3d0] sm:$0xff]
    %v272 = vld [vmem:[#allocation9 + $0x3d8] sm:$0xff]
    %v273 = vld [vmem:[#allocation9 + $0x3e0] sm:$0xff]
    %v274 = vld [vmem:[#allocation9 + $0x3e8] sm:$0xff]
    %v275 = vld [vmem:[#allocation9 + $0x3f0] sm:$0xff]
    %v276 = vld [vmem:[#allocation9 + $0x3f8] sm:$0xff]
    %v278 = vlaneseq
    %v279 = vshrl.u32 %v278, 7
    %v280 = vsub.s32 0, %v279
    %v281 = vrot.slane %v148, %v280
    %v282 = vlaneseq
    %v283 = vshrl.u32 %v282, 7
    %v284 = vsub.s32 1, %v283
    %v285 = vrot.slane %v148, %v284
    %v286 = vlaneseq
    %v287 = vshrl.u32 %v286, 7
    %v288 = vsub.s32 2, %v287
    %v289 = vrot.slane %v148, %v288
    %v290 = vlaneseq
    %v291 = vshrl.u32 %v290, 7
    %v292 = vsub.s32 3, %v291
    %v293 = vrot.slane %v148, %v292
    %v306 = vunpack.c.l.b16 %v140
    %v307 = vunpack.c.h.b16 %v140
    %v308 = vunpack.c.l.b16 %v141
    %v309 = vunpack.c.h.b16 %v141
    %v310 = vunpack.c.l.b16 %v142
    %v311 = vunpack.c.h.b16 %v142
    %v312 = vunpack.c.l.b16 %v143
    %v313 = vunpack.c.h.b16 %v143
    %v314 = vunpack.c.l.b16 %v144
    %v315 = vunpack.c.h.b16 %v144
    %v316 = vunpack.c.l.b16 %v145
    %v317 = vunpack.c.h.b16 %v145
    %v318 = vunpack.c.l.b16 %v146
    %v319 = vunpack.c.h.b16 %v146
    %v320 = vunpack.c.l.b16 %v147
    %v321 = vunpack.c.h.b16 %v147
    %v322 = vpack.c.b16 %v310, %v306
    %v323 = vpack.c.b16 %v311, %v307
    %v324 = vpack.c.b16 %v312, %v308
    %v325 = vpack.c.b16 %v313, %v309
    %v326 = vpack.c.b16 %v318, %v314
    %v327 = vpack.c.b16 %v319, %v315
    %v328 = vpack.c.b16 %v320, %v316
    %v329 = vpack.c.b16 %v321, %v317
    %v466 = vunpack.c.l.b16 %v149
    %v467 = vunpack.c.h.b16 %v149
    %v468 = vunpack.c.l.b16 %v150
    %v469 = vunpack.c.h.b16 %v150
    %v470 = vunpack.c.l.b16 %v151
    %v471 = vunpack.c.h.b16 %v151
    %v472 = vunpack.c.l.b16 %v152
    %v473 = vunpack.c.h.b16 %v152
    %v474 = vunpack.c.l.b16 %v153
    %v475 = vunpack.c.h.b16 %v153
    %v476 = vunpack.c.l.b16 %v154
    %v477 = vunpack.c.h.b16 %v154
    %v478 = vunpack.c.l.b16 %v155
    %v479 = vunpack.c.h.b16 %v155
    %v480 = vunpack.c.l.b16 %v156
    %v481 = vunpack.c.h.b16 %v156
    %v482 = vunpack.c.l.b16 %v157
    %v483 = vunpack.c.h.b16 %v157
    %v484 = vunpack.c.l.b16 %v158
    %v485 = vunpack.c.h.b16 %v158
    %v486 = vunpack.c.l.b16 %v159
    %v487 = vunpack.c.h.b16 %v159
    %v488 = vunpack.c.l.b16 %v160
    %v489 = vunpack.c.h.b16 %v160
    %v490 = vunpack.c.l.b16 %v161
    %v491 = vunpack.c.h.b16 %v161
    %v492 = vunpack.c.l.b16 %v162
    %v493 = vunpack.c.h.b16 %v162
    %v494 = vunpack.c.l.b16 %v163
    %v495 = vunpack.c.h.b16 %v163
    %v496 = vunpack.c.l.b16 %v164
    %v497 = vunpack.c.h.b16 %v164
    %v498 = vunpack.c.l.b16 %v165
    %v499 = vunpack.c.h.b16 %v165
    %v500 = vunpack.c.l.b16 %v166
    %v501 = vunpack.c.h.b16 %v166
    %v502 = vunpack.c.l.b16 %v167
    %v503 = vunpack.c.h.b16 %v167
    %v504 = vunpack.c.l.b16 %v168
    %v505 = vunpack.c.h.b16 %v168
    %v506 = vunpack.c.l.b16 %v169
    %v507 = vunpack.c.h.b16 %v169
    %v508 = vunpack.c.l.b16 %v170
    %v509 = vunpack.c.h.b16 %v170
    %v510 = vunpack.c.l.b16 %v171
    %v511 = vunpack.c.h.b16 %v171
    %v512 = vunpack.c.l.b16 %v172
    %v513 = vunpack.c.h.b16 %v172
    %v514 = vunpack.c.l.b16 %v173
    %v515 = vunpack.c.h.b16 %v173
    %v516 = vunpack.c.l.b16 %v174
    %v517 = vunpack.c.h.b16 %v174
    %v518 = vunpack.c.l.b16 %v175
    %v519 = vunpack.c.h.b16 %v175
    %v520 = vunpack.c.l.b16 %v176
    %v521 = vunpack.c.h.b16 %v176
    %v522 = vunpack.c.l.b16 %v177
    %v523 = vunpack.c.h.b16 %v177
    %v524 = vunpack.c.l.b16 %v178
    %v525 = vunpack.c.h.b16 %v178
    %v526 = vunpack.c.l.b16 %v179
    %v527 = vunpack.c.h.b16 %v179
    %v528 = vunpack.c.l.b16 %v180
    %v529 = vunpack.c.h.b16 %v180
    %v530 = vunpack.c.l.b16 %v181
    %v531 = vunpack.c.h.b16 %v181
    %v532 = vunpack.c.l.b16 %v182
    %v533 = vunpack.c.h.b16 %v182
    %v534 = vunpack.c.l.b16 %v183
    %v535 = vunpack.c.h.b16 %v183
    %v536 = vunpack.c.l.b16 %v184
    %v537 = vunpack.c.h.b16 %v184
    %v538 = vunpack.c.l.b16 %v185
    %v539 = vunpack.c.h.b16 %v185
    %v540 = vunpack.c.l.b16 %v186
    %v541 = vunpack.c.h.b16 %v186
    %v542 = vunpack.c.l.b16 %v187
    %v543 = vunpack.c.h.b16 %v187
    %v544 = vunpack.c.l.b16 %v188
    %v545 = vunpack.c.h.b16 %v188
    %v546 = vunpack.c.l.b16 %v189
    %v547 = vunpack.c.h.b16 %v189
    %v548 = vunpack.c.l.b16 %v190
    %v549 = vunpack.c.h.b16 %v190
    %v550 = vunpack.c.l.b16 %v191
    %v551 = vunpack.c.h.b16 %v191
    %v552 = vunpack.c.l.b16 %v192
    %v553 = vunpack.c.h.b16 %v192
    %v554 = vunpack.c.l.b16 %v193
    %v555 = vunpack.c.h.b16 %v193
    %v556 = vunpack.c.l.b16 %v194
    %v557 = vunpack.c.h.b16 %v194
    %v558 = vunpack.c.l.b16 %v195
    %v559 = vunpack.c.h.b16 %v195
    %v560 = vunpack.c.l.b16 %v196
    %v561 = vunpack.c.h.b16 %v196
    %v562 = vunpack.c.l.b16 %v197
    %v563 = vunpack.c.h.b16 %v197
    %v564 = vunpack.c.l.b16 %v198
    %v565 = vunpack.c.h.b16 %v198
    %v566 = vunpack.c.l.b16 %v199
    %v567 = vunpack.c.h.b16 %v199
    %v568 = vunpack.c.l.b16 %v200
    %v569 = vunpack.c.h.b16 %v200
    %v570 = vunpack.c.l.b16 %v201
    %v571 = vunpack.c.h.b16 %v201
    %v572 = vunpack.c.l.b16 %v202
    %v573 = vunpack.c.h.b16 %v202
    %v574 = vunpack.c.l.b16 %v203
    %v575 = vunpack.c.h.b16 %v203
    %v576 = vunpack.c.l.b16 %v204
    %v577 = vunpack.c.h.b16 %v204
    %v578 = vunpack.c.l.b16 %v205
    %v579 = vunpack.c.h.b16 %v205
    %v580 = vunpack.c.l.b16 %v206
    %v581 = vunpack.c.h.b16 %v206
    %v582 = vunpack.c.l.b16 %v207
    %v583 = vunpack.c.h.b16 %v207
    %v584 = vunpack.c.l.b16 %v208
    %v585 = vunpack.c.h.b16 %v208
    %v586 = vunpack.c.l.b16 %v209
    %v587 = vunpack.c.h.b16 %v209
    %v588 = vunpack.c.l.b16 %v210
    %v589 = vunpack.c.h.b16 %v210
    %v590 = vunpack.c.l.b16 %v211
    %v591 = vunpack.c.h.b16 %v211
    %v592 = vunpack.c.l.b16 %v212
    %v593 = vunpack.c.h.b16 %v212
    %v594 = vunpack.c.l.b16 %v213
    %v595 = vunpack.c.h.b16 %v213
    %v596 = vunpack.c.l.b16 %v214
    %v597 = vunpack.c.h.b16 %v214
    %v598 = vunpack.c.l.b16 %v215
    %v599 = vunpack.c.h.b16 %v215
    %v600 = vunpack.c.l.b16 %v216
    %v601 = vunpack.c.h.b16 %v216
    %v602 = vunpack.c.l.b16 %v217
    %v603 = vunpack.c.h.b16 %v217
    %v604 = vunpack.c.l.b16 %v218
    %v605 = vunpack.c.h.b16 %v218
    %v606 = vunpack.c.l.b16 %v219
    %v607 = vunpack.c.h.b16 %v219
    %v608 = vunpack.c.l.b16 %v220
    %v609 = vunpack.c.h.b16 %v220
    %v610 = vunpack.c.l.b16 %v221
    %v611 = vunpack.c.h.b16 %v221
    %v612 = vunpack.c.l.b16 %v222
    %v613 = vunpack.c.h.b16 %v222
    %v614 = vunpack.c.l.b16 %v223
    %v615 = vunpack.c.h.b16 %v223
    %v616 = vunpack.c.l.b16 %v224
    %v617 = vunpack.c.h.b16 %v224
    %v618 = vunpack.c.l.b16 %v225
    %v619 = vunpack.c.h.b16 %v225
    %v620 = vunpack.c.l.b16 %v226
    %v621 = vunpack.c.h.b16 %v226
    %v622 = vunpack.c.l.b16 %v227
    %v623 = vunpack.c.h.b16 %v227
    %v624 = vunpack.c.l.b16 %v228
    %v625 = vunpack.c.h.b16 %v228
    %v626 = vunpack.c.l.b16 %v229
    %v627 = vunpack.c.h.b16 %v229
    %v628 = vunpack.c.l.b16 %v230
    %v629 = vunpack.c.h.b16 %v230
    %v630 = vunpack.c.l.b16 %v231
    %v631 = vunpack.c.h.b16 %v231
    %v632 = vunpack.c.l.b16 %v232
    %v633 = vunpack.c.h.b16 %v232
    %v634 = vunpack.c.l.b16 %v233
    %v635 = vunpack.c.h.b16 %v233
    %v636 = vunpack.c.l.b16 %v234
    %v637 = vunpack.c.h.b16 %v234
    %v638 = vunpack.c.l.b16 %v235
    %v639 = vunpack.c.h.b16 %v235
    %v640 = vunpack.c.l.b16 %v236
    %v641 = vunpack.c.h.b16 %v236
    %v642 = vunpack.c.l.b16 %v237
    %v643 = vunpack.c.h.b16 %v237
    %v644 = vunpack.c.l.b16 %v238
    %v645 = vunpack.c.h.b16 %v238
    %v646 = vunpack.c.l.b16 %v239
    %v647 = vunpack.c.h.b16 %v239
    %v648 = vunpack.c.l.b16 %v240
    %v649 = vunpack.c.h.b16 %v240
    %v650 = vunpack.c.l.b16 %v241
    %v651 = vunpack.c.h.b16 %v241
    %v652 = vunpack.c.l.b16 %v242
    %v653 = vunpack.c.h.b16 %v242
    %v654 = vunpack.c.l.b16 %v243
    %v655 = vunpack.c.h.b16 %v243
    %v656 = vunpack.c.l.b16 %v244
    %v657 = vunpack.c.h.b16 %v244
    %v658 = vunpack.c.l.b16 %v245
    %v659 = vunpack.c.h.b16 %v245
    %v660 = vunpack.c.l.b16 %v246
    %v661 = vunpack.c.h.b16 %v246
    %v662 = vunpack.c.l.b16 %v247
    %v663 = vunpack.c.h.b16 %v247
    %v664 = vunpack.c.l.b16 %v248
    %v665 = vunpack.c.h.b16 %v248
    %v666 = vunpack.c.l.b16 %v249
    %v667 = vunpack.c.h.b16 %v249
    %v668 = vunpack.c.l.b16 %v250
    %v669 = vunpack.c.h.b16 %v250
    %v670 = vunpack.c.l.b16 %v251
    %v671 = vunpack.c.h.b16 %v251
    %v672 = vunpack.c.l.b16 %v252
    %v673 = vunpack.c.h.b16 %v252
    %v674 = vunpack.c.l.b16 %v253
    %v675 = vunpack.c.h.b16 %v253
    %v676 = vunpack.c.l.b16 %v254
    %v677 = vunpack.c.h.b16 %v254
    %v678 = vunpack.c.l.b16 %v255
    %v679 = vunpack.c.h.b16 %v255
    %v680 = vunpack.c.l.b16 %v256
    %v681 = vunpack.c.h.b16 %v256
    %v682 = vunpack.c.l.b16 %v257
    %v683 = vunpack.c.h.b16 %v257
    %v684 = vunpack.c.l.b16 %v258
    %v685 = vunpack.c.h.b16 %v258
    %v686 = vunpack.c.l.b16 %v259
    %v687 = vunpack.c.h.b16 %v259
    %v688 = vunpack.c.l.b16 %v260
    %v689 = vunpack.c.h.b16 %v260
    %v690 = vunpack.c.l.b16 %v261
    %v691 = vunpack.c.h.b16 %v261
    %v692 = vunpack.c.l.b16 %v262
    %v693 = vunpack.c.h.b16 %v262
    %v694 = vunpack.c.l.b16 %v263
    %v695 = vunpack.c.h.b16 %v263
    %v696 = vunpack.c.l.b16 %v264
    %v697 = vunpack.c.h.b16 %v264
    %v698 = vunpack.c.l.b16 %v265
    %v699 = vunpack.c.h.b16 %v265
    %v700 = vunpack.c.l.b16 %v266
    %v701 = vunpack.c.h.b16 %v266
    %v702 = vunpack.c.l.b16 %v267
    %v703 = vunpack.c.h.b16 %v267
    %v704 = vunpack.c.l.b16 %v268
    %v705 = vunpack.c.h.b16 %v268
    %v706 = vunpack.c.l.b16 %v269
    %v707 = vunpack.c.h.b16 %v269
    %v708 = vunpack.c.l.b16 %v270
    %v709 = vunpack.c.h.b16 %v270
    %v710 = vunpack.c.l.b16 %v271
    %v711 = vunpack.c.h.b16 %v271
    %v712 = vunpack.c.l.b16 %v272
    %v713 = vunpack.c.h.b16 %v272
    %v714 = vunpack.c.l.b16 %v273
    %v715 = vunpack.c.h.b16 %v273
    %v716 = vunpack.c.l.b16 %v274
    %v717 = vunpack.c.h.b16 %v274
    %v718 = vunpack.c.l.b16 %v275
    %v719 = vunpack.c.h.b16 %v275
    %v720 = vunpack.c.l.b16 %v276
    %v721 = vunpack.c.h.b16 %v276
    %v722 = vpack.c.b16 %v470, %v466
    %v723 = vpack.c.b16 %v471, %v467
    %v724 = vpack.c.b16 %v472, %v468
    %v725 = vpack.c.b16 %v473, %v469
    %v726 = vpack.c.b16 %v478, %v474
    %v727 = vpack.c.b16 %v479, %v475
    %v728 = vpack.c.b16 %v480, %v476
    %v729 = vpack.c.b16 %v481, %v477
    %v730 = vpack.c.b16 %v486, %v482
    %v731 = vpack.c.b16 %v487, %v483
    %v732 = vpack.c.b16 %v488, %v484
    %v733 = vpack.c.b16 %v489, %v485
    %v734 = vpack.c.b16 %v494, %v490
    %v735 = vpack.c.b16 %v495, %v491
    %v736 = vpack.c.b16 %v496, %v492
    %v737 = vpack.c.b16 %v497, %v493
    %v738 = vpack.c.b16 %v502, %v498
    %v739 = vpack.c.b16 %v503, %v499
    %v740 = vpack.c.b16 %v504, %v500
    %v741 = vpack.c.b16 %v505, %v501
    %v742 = vpack.c.b16 %v510, %v506
    %v743 = vpack.c.b16 %v511, %v507
    %v744 = vpack.c.b16 %v512, %v508
    %v745 = vpack.c.b16 %v513, %v509
    %v746 = vpack.c.b16 %v518, %v514
    %v747 = vpack.c.b16 %v519, %v515
    %v748 = vpack.c.b16 %v520, %v516
    %v749 = vpack.c.b16 %v521, %v517
    %v750 = vpack.c.b16 %v526, %v522
    %v751 = vpack.c.b16 %v527, %v523
    %v752 = vpack.c.b16 %v528, %v524
    %v753 = vpack.c.b16 %v529, %v525
    %v754 = vpack.c.b16 %v534, %v530
    %v755 = vpack.c.b16 %v535, %v531
    %v756 = vpack.c.b16 %v536, %v532
    %v757 = vpack.c.b16 %v537, %v533
    %v758 = vpack.c.b16 %v542, %v538
    %v759 = vpack.c.b16 %v543, %v539
    %v760 = vpack.c.b16 %v544, %v540
    %v761 = vpack.c.b16 %v545, %v541
    %v762 = vpack.c.b16 %v550, %v546
    %v763 = vpack.c.b16 %v551, %v547
    %v764 = vpack.c.b16 %v552, %v548
    %v765 = vpack.c.b16 %v553, %v549
    %v766 = vpack.c.b16 %v558, %v554
    %v767 = vpack.c.b16 %v559, %v555
    %v768 = vpack.c.b16 %v560, %v556
    %v769 = vpack.c.b16 %v561, %v557
    %v770 = vpack.c.b16 %v566, %v562
    %v771 = vpack.c.b16 %v567, %v563
    %v772 = vpack.c.b16 %v568, %v564
    %v773 = vpack.c.b16 %v569, %v565
    %v774 = vpack.c.b16 %v574, %v570
    %v775 = vpack.c.b16 %v575, %v571
    %v776 = vpack.c.b16 %v576, %v572
    %v777 = vpack.c.b16 %v577, %v573
    %v778 = vpack.c.b16 %v582, %v578
    %v779 = vpack.c.b16 %v583, %v579
    %v780 = vpack.c.b16 %v584, %v580
    %v781 = vpack.c.b16 %v585, %v581
    %v782 = vpack.c.b16 %v590, %v586
    %v783 = vpack.c.b16 %v591, %v587
    %v784 = vpack.c.b16 %v592, %v588
    %v785 = vpack.c.b16 %v593, %v589
    %v786 = vpack.c.b16 %v598, %v594
    %v787 = vpack.c.b16 %v599, %v595
    %v788 = vpack.c.b16 %v600, %v596
    %v789 = vpack.c.b16 %v601, %v597
    %v790 = vpack.c.b16 %v606, %v602
    %v791 = vpack.c.b16 %v607, %v603
    %v792 = vpack.c.b16 %v608, %v604
    %v793 = vpack.c.b16 %v609, %v605
    %v794 = vpack.c.b16 %v614, %v610
    %v795 = vpack.c.b16 %v615, %v611
    %v796 = vpack.c.b16 %v616, %v612
    %v797 = vpack.c.b16 %v617, %v613
    %v798 = vpack.c.b16 %v622, %v618
    %v799 = vpack.c.b16 %v623, %v619
    %v800 = vpack.c.b16 %v624, %v620
    %v801 = vpack.c.b16 %v625, %v621
    %v802 = vpack.c.b16 %v630, %v626
    %v803 = vpack.c.b16 %v631, %v627
    %v804 = vpack.c.b16 %v632, %v628
    %v805 = vpack.c.b16 %v633, %v629
    %v806 = vpack.c.b16 %v638, %v634
    %v807 = vpack.c.b16 %v639, %v635
    %v808 = vpack.c.b16 %v640, %v636
    %v809 = vpack.c.b16 %v641, %v637
    %v810 = vpack.c.b16 %v646, %v642
    %v811 = vpack.c.b16 %v647, %v643
    %v812 = vpack.c.b16 %v648, %v644
    %v813 = vpack.c.b16 %v649, %v645
    %v814 = vpack.c.b16 %v654, %v650
    %v815 = vpack.c.b16 %v655, %v651
    %v816 = vpack.c.b16 %v656, %v652
    %v817 = vpack.c.b16 %v657, %v653
    %v818 = vpack.c.b16 %v662, %v658
    %v819 = vpack.c.b16 %v663, %v659
    %v820 = vpack.c.b16 %v664, %v660
    %v821 = vpack.c.b16 %v665, %v661
    %v822 = vpack.c.b16 %v670, %v666
    %v823 = vpack.c.b16 %v671, %v667
    %v824 = vpack.c.b16 %v672, %v668
    %v825 = vpack.c.b16 %v673, %v669
    %v826 = vpack.c.b16 %v678, %v674
    %v827 = vpack.c.b16 %v679, %v675
    %v828 = vpack.c.b16 %v680, %v676
    %v829 = vpack.c.b16 %v681, %v677
    %v830 = vpack.c.b16 %v686, %v682
    %v831 = vpack.c.b16 %v687, %v683
    %v832 = vpack.c.b16 %v688, %v684
    %v833 = vpack.c.b16 %v689, %v685
    %v834 = vpack.c.b16 %v694, %v690
    %v835 = vpack.c.b16 %v695, %v691
    %v836 = vpack.c.b16 %v696, %v692
    %v837 = vpack.c.b16 %v697, %v693
    %v838 = vpack.c.b16 %v702, %v698
    %v839 = vpack.c.b16 %v703, %v699
    %v840 = vpack.c.b16 %v704, %v700
    %v841 = vpack.c.b16 %v705, %v701
    %v842 = vpack.c.b16 %v710, %v706
    %v843 = vpack.c.b16 %v711, %v707
    %v844 = vpack.c.b16 %v712, %v708
    %v845 = vpack.c.b16 %v713, %v709
    %v846 = vpack.c.b16 %v718, %v714
    %v847 = vpack.c.b16 %v719, %v715
    %v848 = vpack.c.b16 %v720, %v716
    %v849 = vpack.c.b16 %v721, %v717
    %978 = vmatprep.subr.bf16.mxu0 %v723
    %979 = vmatpush1.bf16.msra.mxu0 %v722
    %980 = vmatprep.subr.bf16.mxu0 %v727
    %981 = vmatpush1.bf16.msra.mxu0 %v726
    %982 = vmatprep.subr.bf16.mxu0 %v731
    %983 = vmatpush1.bf16.msra.mxu0 %v730
    %984 = vmatprep.subr.bf16.mxu0 %v735
    %985 = vmatpush1.bf16.msra.mxu0 %v734
    %986 = vmatprep.subr.bf16.mxu0 %v739
    %987 = vmatpush1.bf16.msra.mxu0 %v738
    %988 = vmatprep.subr.bf16.mxu0 %v743
    %989 = vmatpush1.bf16.msra.mxu0 %v742
    %990 = vmatprep.subr.bf16.mxu0 %v747
    %991 = vmatpush1.bf16.msra.mxu0 %v746
    %992 = vmatprep.subr.bf16.mxu0 %v751
    %993 = vmatpush1.bf16.msra.mxu0 %v750
    %994 = vmatprep.subr.bf16.mxu0 %v755
    %995 = vmatpush1.bf16.msra.mxu0 %v754
    %996 = vmatprep.subr.bf16.mxu0 %v759
    %997 = vmatpush1.bf16.msra.mxu0 %v758
    %998 = vmatprep.subr.bf16.mxu0 %v763
    %999 = vmatpush1.bf16.msra.mxu0 %v762
    %1000 = vmatprep.subr.bf16.mxu0 %v767
    %1001 = vmatpush1.bf16.msra.mxu0 %v766
    %1002 = vmatprep.subr.bf16.mxu0 %v771
    %1003 = vmatpush1.bf16.msra.mxu0 %v770
    %1004 = vmatprep.subr.bf16.mxu0 %v775
    %1005 = vmatpush1.bf16.msra.mxu0 %v774
    %1006 = vmatprep.subr.bf16.mxu0 %v779
    %1007 = vmatpush1.bf16.msra.mxu0 %v778
    %1008 = vmatprep.subr.bf16.mxu0 %v783
    %1009 = vmatpush1.bf16.msra.mxu0 %v782
    %1010 = vmatprep.mubr.bf16.mxu0 %v323
    %1011 = vmatmul.mubr.bf16.gmra.mrb[0].mxu0 %v322
    %v1012 = vpop.f32.mrb[0].mxu0
    %v1013 = vadd.f32 %v281, %v1012
    %v1014 = vpop.f32.mrb[0].mxu0
    %v1015 = vadd.f32 %v285, %v1014
    %v1016 = vpop.f32.mrb[0].mxu0
    %v1017 = vadd.f32 %v281, %v1016
    %v1018 = vpop.f32.mrb[0].mxu0
    %v1019 = vadd.f32 %v285, %v1018
    %1020 = vmatprep.mubr.bf16.mxu0 %v327
    %1021 = vmatmul.mubr.bf16.gmra.mrb[0].mxu0 %v326
    %v1022 = vpop.f32.mrb[0].mxu0
    %v1023 = vadd.f32 %v281, %v1022
    %v1024 = vpop.f32.mrb[0].mxu0
    %v1025 = vadd.f32 %v285, %v1024
    %v1026 = vpop.f32.mrb[0].mxu0
    %v1027 = vadd.f32 %v281, %v1026
    %v1028 = vpop.f32.mrb[0].mxu0
    %v1029 = vadd.f32 %v285, %v1028
    %1030 = vdwg.mxu0
    %1031 = vmatprep.subr.bf16.mxu0 %v787
    %1032 = vmatpush1.bf16.msra.mxu0 %v786
    %1033 = vmatprep.subr.bf16.mxu0 %v791
    %1034 = vmatpush1.bf16.msra.mxu0 %v790
    %1035 = vmatprep.subr.bf16.mxu0 %v795
    %1036 = vmatpush1.bf16.msra.mxu0 %v794
    %1037 = vmatprep.subr.bf16.mxu0 %v799
    %1038 = vmatpush1.bf16.msra.mxu0 %v798
    %1039 = vmatprep.subr.bf16.mxu0 %v803
    %1040 = vmatpush1.bf16.msra.mxu0 %v802
    %1041 = vmatprep.subr.bf16.mxu0 %v807
    %1042 = vmatpush1.bf16.msra.mxu0 %v806
    %1043 = vmatprep.subr.bf16.mxu0 %v811
    %1044 = vmatpush1.bf16.msra.mxu0 %v810
    %1045 = vmatprep.subr.bf16.mxu0 %v815
    %1046 = vmatpush1.bf16.msra.mxu0 %v814
    %1047 = vmatprep.subr.bf16.mxu0 %v819
    %1048 = vmatpush1.bf16.msra.mxu0 %v818
    %1049 = vmatprep.subr.bf16.mxu0 %v823
    %1050 = vmatpush1.bf16.msra.mxu0 %v822
    %1051 = vmatprep.subr.bf16.mxu0 %v827
    %1052 = vmatpush1.bf16.msra.mxu0 %v826
    %1053 = vmatprep.subr.bf16.mxu0 %v831
    %1054 = vmatpush1.bf16.msra.mxu0 %v830
    %1055 = vmatprep.subr.bf16.mxu0 %v835
    %1056 = vmatpush1.bf16.msra.mxu0 %v834
    %1057 = vmatprep.subr.bf16.mxu0 %v839
    %1058 = vmatpush1.bf16.msra.mxu0 %v838
    %1059 = vmatprep.subr.bf16.mxu0 %v843
    %1060 = vmatpush1.bf16.msra.mxu0 %v842
    %1061 = vmatprep.subr.bf16.mxu0 %v847
    %1062 = vmatpush1.bf16.msra.mxu0 %v846
    %1063 = vmatprep.mubr.bf16.mxu0 %v325
    %1064 = vmatmul.mubr.bf16.gmra.mrb[0].mxu0 %v324
    %v1065 = vpop.f32.mrb[0].mxu0
    %v1066 = vadd.f32 %v1013, %v1065
    %v1067 = vpop.f32.mrb[0].mxu0
    %v1068 = vadd.f32 %v1015, %v1067
    %v1069 = vpop.f32.mrb[0].mxu0
    %v1070 = vadd.f32 %v1017, %v1069
    %v1071 = vpop.f32.mrb[0].mxu0
    %v1072 = vadd.f32 %v1019, %v1071
    %1073 = vmatprep.mubr.bf16.mxu0 %v329
    %1074 = vmatmul.mubr.bf16.gmra.mrb[0].mxu0 %v328
    %v1075 = vpop.f32.mrb[0].mxu0
    %v1076 = vadd.f32 %v1023, %v1075
    %v1077 = vpop.f32.mrb[0].mxu0
    %v1078 = vadd.f32 %v1025, %v1077
    %v1079 = vpop.f32.mrb[0].mxu0
    %v1080 = vadd.f32 %v1027, %v1079
    %v1081 = vpop.f32.mrb[0].mxu0
    %v1082 = vadd.f32 %v1029, %v1081
    %1083 = vdwg.mxu0
    %1084 = vmatprep.subr.bf16.mxu0 %v725
    %1085 = vmatpush1.bf16.msra.mxu0 %v724
    %1086 = vmatprep.subr.bf16.mxu0 %v729
    %1087 = vmatpush1.bf16.msra.mxu0 %v728
    %1088 = vmatprep.subr.bf16.mxu0 %v733
    %1089 = vmatpush1.bf16.msra.mxu0 %v732
    %1090 = vmatprep.subr.bf16.mxu0 %v737
    %1091 = vmatpush1.bf16.msra.mxu0 %v736
    %1092 = vmatprep.subr.bf16.mxu0 %v741
    %1093 = vmatpush1.bf16.msra.mxu0 %v740
    %1094 = vmatprep.subr.bf16.mxu0 %v745
    %1095 = vmatpush1.bf16.msra.mxu0 %v744
    %1096 = vmatprep.subr.bf16.mxu0 %v749
    %1097 = vmatpush1.bf16.msra.mxu0 %v748
    %1098 = vmatprep.subr.bf16.mxu0 %v753
    %1099 = vmatpush1.bf16.msra.mxu0 %v752
    %1100 = vmatprep.subr.bf16.mxu0 %v757
    %1101 = vmatpush1.bf16.msra.mxu0 %v756
    %1102 = vmatprep.subr.bf16.mxu0 %v761
    %1103 = vmatpush1.bf16.msra.mxu0 %v760
    %1104 = vmatprep.subr.bf16.mxu0 %v765
    %1105 = vmatpush1.bf16.msra.mxu0 %v764
    %1106 = vmatprep.subr.bf16.mxu0 %v769
    %1107 = vmatpush1.bf16.msra.mxu0 %v768
    %1108 = vmatprep.subr.bf16.mxu0 %v773
    %1109 = vmatpush1.bf16.msra.mxu0 %v772
    %1110 = vmatprep.subr.bf16.mxu0 %v777
    %1111 = vmatpush1.bf16.msra.mxu0 %v776
    %1112 = vmatprep.subr.bf16.mxu0 %v781
    %1113 = vmatpush1.bf16.msra.mxu0 %v780
    %1114 = vmatprep.subr.bf16.mxu0 %v785
    %1115 = vmatpush1.bf16.msra.mxu0 %v784
    %1116 = vmatprep.mubr.bf16.mxu0 %v323
    %1117 = vmatmul.mubr.bf16.gmra.mrb[0].mxu0 %v322
    %v1118 = vpop.f32.mrb[0].mxu0
    %v1119 = vadd.f32 %v289, %v1118
    %v1120 = vpop.f32.mrb[0].mxu0
    %v1121 = vadd.f32 %v293, %v1120
    %v1122 = vpop.f32.mrb[0].mxu0
    %v1123 = vadd.f32 %v289, %v1122
    %v1124 = vpop.f32.mrb[0].mxu0
    %v1125 = vadd.f32 %v293, %v1124
    %1126 = vmatprep.mubr.bf16.mxu0 %v327
    %1127 = vmatmul.mubr.bf16.gmra.mrb[0].mxu0 %v326
    %v1128 = vpop.f32.mrb[0].mxu0
    %v1129 = vadd.f32 %v289, %v1128
    %v1130 = vpop.f32.mrb[0].mxu0
    %v1131 = vadd.f32 %v293, %v1130
    %v1132 = vpop.f32.mrb[0].mxu0
    %v1133 = vadd.f32 %v289, %v1132
    %v1134 = vpop.f32.mrb[0].mxu0
    %v1135 = vadd.f32 %v293, %v1134
    %1136 = vdwg.mxu0
    %1137 = vmatprep.subr.bf16.mxu0 %v789
    %1138 = vmatpush1.bf16.msra.mxu0 %v788
    %1139 = vmatprep.subr.bf16.mxu0 %v793
    %1140 = vmatpush1.bf16.msra.mxu0 %v792
    %1141 = vmatprep.subr.bf16.mxu0 %v797
    %1142 = vmatpush1.bf16.msra.mxu0 %v796
    %1143 = vmatprep.subr.bf16.mxu0 %v801
    %1144 = vmatpush1.bf16.msra.mxu0 %v800
    %1145 = vmatprep.subr.bf16.mxu0 %v805
    %1146 = vmatpush1.bf16.msra.mxu0 %v804
    %1147 = vmatprep.subr.bf16.mxu0 %v809
    %1148 = vmatpush1.bf16.msra.mxu0 %v808
    %1149 = vmatprep.subr.bf16.mxu0 %v813
    %1150 = vmatpush1.bf16.msra.mxu0 %v812
    %1151 = vmatprep.subr.bf16.mxu0 %v817
    %1152 = vmatpush1.bf16.msra.mxu0 %v816
    %1153 = vmatprep.subr.bf16.mxu0 %v821
    %1154 = vmatpush1.bf16.msra.mxu0 %v820
    %1155 = vmatprep.subr.bf16.mxu0 %v825
    %1156 = vmatpush1.bf16.msra.mxu0 %v824
    %1157 = vmatprep.subr.bf16.mxu0 %v829
    %1158 = vmatpush1.bf16.msra.mxu0 %v828
    %1159 = vmatprep.subr.bf16.mxu0 %v833
    %1160 = vmatpush1.bf16.msra.mxu0 %v832
    %1161 = vmatprep.subr.bf16.mxu0 %v837
    %1162 = vmatpush1.bf16.msra.mxu0 %v836
    %1163 = vmatprep.subr.bf16.mxu0 %v841
    %1164 = vmatpush1.bf16.msra.mxu0 %v840
    %1165 = vmatprep.subr.bf16.mxu0 %v845
    %1166 = vmatpush1.bf16.msra.mxu0 %v844
    %1167 = vmatprep.subr.bf16.mxu0 %v849
    %1168 = vmatpush1.bf16.msra.mxu0 %v848
    %1169 = vmatprep.mubr.bf16.mxu0 %v325
    %1170 = vmatmul.mubr.bf16.gmra.mrb[0].mxu0 %v324
    %v1171 = vpop.f32.mrb[0].mxu0
    %v1172 = vadd.f32 %v1119, %v1171
    %v1173 = vpop.f32.mrb[0].mxu0
    %v1174 = vadd.f32 %v1121, %v1173
    %v1175 = vpop.f32.mrb[0].mxu0
    %v1176 = vadd.f32 %v1123, %v1175
    %v1177 = vpop.f32.mrb[0].mxu0
    %v1178 = vadd.f32 %v1125, %v1177
    %1179 = vmatprep.mubr.bf16.mxu0 %v329
    %1180 = vmatmul.mubr.bf16.gmra.mrb[0].mxu0 %v328
    %v1181 = vpop.f32.mrb[0].mxu0
    %v1182 = vadd.f32 %v1129, %v1181
    %v1183 = vpop.f32.mrb[0].mxu0
    %v1184 = vadd.f32 %v1131, %v1183
    %v1185 = vpop.f32.mrb[0].mxu0
    %v1186 = vadd.f32 %v1133, %v1185
    %v1187 = vpop.f32.mrb[0].mxu0
    %v1188 = vadd.f32 %v1135, %v1187
    %1189 = vdwg.mxu0
    %vm1190 = vcmp.gt.f32.partialorder %v1066, 0.0
    %vm1191 = vcmp.gt.f32.partialorder %v1068, 0.0
    %vm1192 = vcmp.gt.f32.partialorder %v1172, 0.0
    %vm1193 = vcmp.gt.f32.partialorder %v1174, 0.0
    %vm1194 = vcmp.gt.f32.partialorder %v1070, 0.0
    %vm1195 = vcmp.gt.f32.partialorder %v1072, 0.0
    %vm1196 = vcmp.gt.f32.partialorder %v1176, 0.0
    %vm1197 = vcmp.gt.f32.partialorder %v1178, 0.0
    %vm1198 = vcmp.gt.f32.partialorder %v1076, 0.0
    %vm1199 = vcmp.gt.f32.partialorder %v1078, 0.0
    %vm1200 = vcmp.gt.f32.partialorder %v1182, 0.0
    %vm1201 = vcmp.gt.f32.partialorder %v1184, 0.0
    %vm1202 = vcmp.gt.f32.partialorder %v1080, 0.0
    %vm1203 = vcmp.gt.f32.partialorder %v1082, 0.0
    %vm1204 = vcmp.gt.f32.partialorder %v1186, 0.0
    %vm1205 = vcmp.gt.f32.partialorder %v1188, 0.0
    %v1206 = vmul.f32 %v1066, 0.1
    %v1207 = vmul.f32 %v1068, 0.1
    %v1208 = vmul.f32 %v1172, 0.1
    %v1209 = vmul.f32 %v1174, 0.1
    %v1210 = vmul.f32 %v1070, 0.1
    %v1211 = vmul.f32 %v1072, 0.1
    %v1212 = vmul.f32 %v1176, 0.1
    %v1213 = vmul.f32 %v1178, 0.1
    %v1214 = vmul.f32 %v1076, 0.1
    %v1215 = vmul.f32 %v1078, 0.1
    %v1216 = vmul.f32 %v1182, 0.1
    %v1217 = vmul.f32 %v1184, 0.1
    %v1218 = vmul.f32 %v1080, 0.1
    %v1219 = vmul.f32 %v1082, 0.1
    %v1220 = vmul.f32 %v1186, 0.1
    %v1221 = vmul.f32 %v1188, 0.1
    %v1222 = vsel %vm1190, %v1066, %v1206
    %v1223 = vsel %vm1191, %v1068, %v1207
    %v1224 = vsel %vm1192, %v1172, %v1208
    %v1225 = vsel %vm1193, %v1174, %v1209
    %v1226 = vsel %vm1194, %v1070, %v1210
    %v1227 = vsel %vm1195, %v1072, %v1211
    %v1228 = vsel %vm1196, %v1176, %v1212
    %v1229 = vsel %vm1197, %v1178, %v1213
    %v1230 = vsel %vm1198, %v1076, %v1214
    %v1231 = vsel %vm1199, %v1078, %v1215
    %v1232 = vsel %vm1200, %v1182, %v1216
    %v1233 = vsel %vm1201, %v1184, %v1217
    %v1234 = vsel %vm1202, %v1080, %v1218
    %v1235 = vsel %vm1203, %v1082, %v1219
    %v1236 = vsel %vm1204, %v1186, %v1220
    %v1237 = vsel %vm1205, %v1188, %v1221
    %v1238 = vpack.c.bf16 %v1226, %v1222
    %v1239 = vpack.c.bf16 %v1227, %v1223
    %v1240 = vpack.c.bf16 %v1228, %v1224
    %v1241 = vpack.c.bf16 %v1229, %v1225
    %v1242 = vpack.c.bf16 %v1234, %v1230
    %v1243 = vpack.c.bf16 %v1235, %v1231
    %v1244 = vpack.c.bf16 %v1236, %v1232
    %v1245 = vpack.c.bf16 %v1237, %v1233
    %v1246 = vld [vmem:[#allocation7 + $0x4] sm:$0x3]
    %v1247 = vld [vmem:[#allocation10] sm:$0xff]
    %v1248 = vld [vmem:[#allocation10 + $0x8] sm:$0xff]
    %v1249 = vld [vmem:[#allocation10 + $0x10] sm:$0xff]
    %v1250 = vld [vmem:[#allocation10 + $0x18] sm:$0xff]
    %v1251 = vld [vmem:[#allocation10 + $0x20] sm:$0xff]
    %v1252 = vld [vmem:[#allocation10 + $0x28] sm:$0xff]
    %v1253 = vld [vmem:[#allocation10 + $0x30] sm:$0xff]
    %v1254 = vld [vmem:[#allocation10 + $0x38] sm:$0xff]
    %v1255 = vld [vmem:[#allocation10 + $0x40] sm:$0xff]
    %v1256 = vld [vmem:[#allocation10 + $0x48] sm:$0xff]
    %v1257 = vld [vmem:[#allocation10 + $0x50] sm:$0xff]
    %v1258 = vld [vmem:[#allocation10 + $0x58] sm:$0xff]
    %v1259 = vld [vmem:[#allocation10 + $0x60] sm:$0xff]
    %v1260 = vld [vmem:[#allocation10 + $0x68] sm:$0xff]
    %v1261 = vld [vmem:[#allocation10 + $0x70] sm:$0xff]
    %v1262 = vld [vmem:[#allocation10 + $0x78] sm:$0xff]
    %v1263 = vld [vmem:[#allocation10 + $0x80] sm:$0xff]
    %v1264 = vld [vmem:[#allocation10 + $0x88] sm:$0xff]
    %v1265 = vld [vmem:[#allocation10 + $0x90] sm:$0xff]
    %v1266 = vld [vmem:[#allocation10 + $0x98] sm:$0xff]
    %v1267 = vld [vmem:[#allocation10 + $0xa0] sm:$0xff]
    %v1268 = vld [vmem:[#allocation10 + $0xa8] sm:$0xff]
    %v1269 = vld [vmem:[#allocation10 + $0xb0] sm:$0xff]
    %v1270 = vld [vmem:[#allocation10 + $0xb8] sm:$0xff]
    %v1271 = vld [vmem:[#allocation10 + $0xc0] sm:$0xff]
    %v1272 = vld [vmem:[#allocation10 + $0xc8] sm:$0xff]
    %v1273 = vld [vmem:[#allocation10 + $0xd0] sm:$0xff]
    %v1274 = vld [vmem:[#allocation10 + $0xd8] sm:$0xff]
    %v1275 = vld [vmem:[#allocation10 + $0xe0] sm:$0xff]
    %v1276 = vld [vmem:[#allocation10 + $0xe8] sm:$0xff]
    %v1277 = vld [vmem:[#allocation10 + $0xf0] sm:$0xff]
    %v1278 = vld [vmem:[#allocation10 + $0xf8] sm:$0xff]
    %v1279 = vld [vmem:[#allocation10 + $0x100] sm:$0xff]
    %v1280 = vld [vmem:[#allocation10 + $0x108] sm:$0xff]
    %v1281 = vld [vmem:[#allocation10 + $0x110] sm:$0xff]
    %v1282 = vld [vmem:[#allocation10 + $0x118] sm:$0xff]
    %v1283 = vld [vmem:[#allocation10 + $0x120] sm:$0xff]
    %v1284 = vld [vmem:[#allocation10 + $0x128] sm:$0xff]
    %v1285 = vld [vmem:[#allocation10 + $0x130] sm:$0xff]
    %v1286 = vld [vmem:[#allocation10 + $0x138] sm:$0xff]
    %v1287 = vld [vmem:[#allocation10 + $0x140] sm:$0xff]
    %v1288 = vld [vmem:[#allocation10 + $0x148] sm:$0xff]
    %v1289 = vld [vmem:[#allocation10 + $0x150] sm:$0xff]
    %v1290 = vld [vmem:[#allocation10 + $0x158] sm:$0xff]
    %v1291 = vld [vmem:[#allocation10 + $0x160] sm:$0xff]
    %v1292 = vld [vmem:[#allocation10 + $0x168] sm:$0xff]
    %v1293 = vld [vmem:[#allocation10 + $0x170] sm:$0xff]
    %v1294 = vld [vmem:[#allocation10 + $0x178] sm:$0xff]
    %v1295 = vld [vmem:[#allocation10 + $0x180] sm:$0xff]
    %v1296 = vld [vmem:[#allocation10 + $0x188] sm:$0xff]
    %v1297 = vld [vmem:[#allocation10 + $0x190] sm:$0xff]
    %v1298 = vld [vmem:[#allocation10 + $0x198] sm:$0xff]
    %v1299 = vld [vmem:[#allocation10 + $0x1a0] sm:$0xff]
    %v1300 = vld [vmem:[#allocation10 + $0x1a8] sm:$0xff]
    %v1301 = vld [vmem:[#allocation10 + $0x1b0] sm:$0xff]
    %v1302 = vld [vmem:[#allocation10 + $0x1b8] sm:$0xff]
    %v1303 = vld [vmem:[#allocation10 + $0x1c0] sm:$0xff]
    %v1304 = vld [vmem:[#allocation10 + $0x1c8] sm:$0xff]
    %v1305 = vld [vmem:[#allocation10 + $0x1d0] sm:$0xff]
    %v1306 = vld [vmem:[#allocation10 + $0x1d8] sm:$0xff]
    %v1307 = vld [vmem:[#allocation10 + $0x1e0] sm:$0xff]
    %v1308 = vld [vmem:[#allocation10 + $0x1e8] sm:$0xff]
    %v1309 = vld [vmem:[#allocation10 + $0x1f0] sm:$0xff]
    %v1310 = vld [vmem:[#allocation10 + $0x1f8] sm:$0xff]
    %v1312 = vlaneseq
    %v1313 = vshrl.u32 %v1312, 7
    %v1314 = vsub.s32 0, %v1313
    %v1315 = vrot.slane %v1246, %v1314
    %v1316 = vlaneseq
    %v1317 = vshrl.u32 %v1316, 7
    %v1318 = vsub.s32 1, %v1317
    %v1319 = vrot.slane %v1246, %v1318
    %v1386 = vunpack.c.l.b16 %v1247
    %v1387 = vunpack.c.h.b16 %v1247
    %v1388 = vunpack.c.l.b16 %v1248
    %v1389 = vunpack.c.h.b16 %v1248
    %v1390 = vunpack.c.l.b16 %v1249
    %v1391 = vunpack.c.h.b16 %v1249
    %v1392 = vunpack.c.l.b16 %v1250
    %v1393 = vunpack.c.h.b16 %v1250
    %v1394 = vunpack.c.l.b16 %v1251
    %v1395 = vunpack.c.h.b16 %v1251
    %v1396 = vunpack.c.l.b16 %v1252
    %v1397 = vunpack.c.h.b16 %v1252
    %v1398 = vunpack.c.l.b16 %v1253
    %v1399 = vunpack.c.h.b16 %v1253
    %v1400 = vunpack.c.l.b16 %v1254
    %v1401 = vunpack.c.h.b16 %v1254
    %v1402 = vunpack.c.l.b16 %v1255
    %v1403 = vunpack.c.h.b16 %v1255
    %v1404 = vunpack.c.l.b16 %v1256
    %v1405 = vunpack.c.h.b16 %v1256
    %v1406 = vunpack.c.l.b16 %v1257
    %v1407 = vunpack.c.h.b16 %v1257
    %v1408 = vunpack.c.l.b16 %v1258
    %v1409 = vunpack.c.h.b16 %v1258
    %v1410 = vunpack.c.l.b16 %v1259
    %v1411 = vunpack.c.h.b16 %v1259
    %v1412 = vunpack.c.l.b16 %v1260
    %v1413 = vunpack.c.h.b16 %v1260
    %v1414 = vunpack.c.l.b16 %v1261
    %v1415 = vunpack.c.h.b16 %v1261
    %v1416 = vunpack.c.l.b16 %v1262
    %v1417 = vunpack.c.h.b16 %v1262
    %v1418 = vunpack.c.l.b16 %v1263
    %v1419 = vunpack.c.h.b16 %v1263
    %v1420 = vunpack.c.l.b16 %v1264
    %v1421 = vunpack.c.h.b16 %v1264
    %v1422 = vunpack.c.l.b16 %v1265
    %v1423 = vunpack.c.h.b16 %v1265
    %v1424 = vunpack.c.l.b16 %v1266
    %v1425 = vunpack.c.h.b16 %v1266
    %v1426 = vunpack.c.l.b16 %v1267
    %v1427 = vunpack.c.h.b16 %v1267
    %v1428 = vunpack.c.l.b16 %v1268
    %v1429 = vunpack.c.h.b16 %v1268
    %v1430 = vunpack.c.l.b16 %v1269
    %v1431 = vunpack.c.h.b16 %v1269
    %v1432 = vunpack.c.l.b16 %v1270
    %v1433 = vunpack.c.h.b16 %v1270
    %v1434 = vunpack.c.l.b16 %v1271
    %v1435 = vunpack.c.h.b16 %v1271
    %v1436 = vunpack.c.l.b16 %v1272
    %v1437 = vunpack.c.h.b16 %v1272
    %v1438 = vunpack.c.l.b16 %v1273
    %v1439 = vunpack.c.h.b16 %v1273
    %v1440 = vunpack.c.l.b16 %v1274
    %v1441 = vunpack.c.h.b16 %v1274
    %v1442 = vunpack.c.l.b16 %v1275
    %v1443 = vunpack.c.h.b16 %v1275
    %v1444 = vunpack.c.l.b16 %v1276
    %v1445 = vunpack.c.h.b16 %v1276
    %v1446 = vunpack.c.l.b16 %v1277
    %v1447 = vunpack.c.h.b16 %v1277
    %v1448 = vunpack.c.l.b16 %v1278
    %v1449 = vunpack.c.h.b16 %v1278
    %v1450 = vunpack.c.l.b16 %v1279
    %v1451 = vunpack.c.h.b16 %v1279
    %v1452 = vunpack.c.l.b16 %v1280
    %v1453 = vunpack.c.h.b16 %v1280
    %v1454 = vunpack.c.l.b16 %v1281
    %v1455 = vunpack.c.h.b16 %v1281
    %v1456 = vunpack.c.l.b16 %v1282
    %v1457 = vunpack.c.h.b16 %v1282
    %v1458 = vunpack.c.l.b16 %v1283
    %v1459 = vunpack.c.h.b16 %v1283
    %v1460 = vunpack.c.l.b16 %v1284
    %v1461 = vunpack.c.h.b16 %v1284
    %v1462 = vunpack.c.l.b16 %v1285
    %v1463 = vunpack.c.h.b16 %v1285
    %v1464 = vunpack.c.l.b16 %v1286
    %v1465 = vunpack.c.h.b16 %v1286
    %v1466 = vunpack.c.l.b16 %v1287
    %v1467 = vunpack.c.h.b16 %v1287
    %v1468 = vunpack.c.l.b16 %v1288
    %v1469 = vunpack.c.h.b16 %v1288
    %v1470 = vunpack.c.l.b16 %v1289
    %v1471 = vunpack.c.h.b16 %v1289
    %v1472 = vunpack.c.l.b16 %v1290
    %v1473 = vunpack.c.h.b16 %v1290
    %v1474 = vunpack.c.l.b16 %v1291
    %v1475 = vunpack.c.h.b16 %v1291
    %v1476 = vunpack.c.l.b16 %v1292
    %v1477 = vunpack.c.h.b16 %v1292
    %v1478 = vunpack.c.l.b16 %v1293
    %v1479 = vunpack.c.h.b16 %v1293
    %v1480 = vunpack.c.l.b16 %v1294
    %v1481 = vunpack.c.h.b16 %v1294
    %v1482 = vunpack.c.l.b16 %v1295
    %v1483 = vunpack.c.h.b16 %v1295
    %v1484 = vunpack.c.l.b16 %v1296
    %v1485 = vunpack.c.h.b16 %v1296
    %v1486 = vunpack.c.l.b16 %v1297
    %v1487 = vunpack.c.h.b16 %v1297
    %v1488 = vunpack.c.l.b16 %v1298
    %v1489 = vunpack.c.h.b16 %v1298
    %v1490 = vunpack.c.l.b16 %v1299
    %v1491 = vunpack.c.h.b16 %v1299
    %v1492 = vunpack.c.l.b16 %v1300
    %v1493 = vunpack.c.h.b16 %v1300
    %v1494 = vunpack.c.l.b16 %v1301
    %v1495 = vunpack.c.h.b16 %v1301
    %v1496 = vunpack.c.l.b16 %v1302
    %v1497 = vunpack.c.h.b16 %v1302
    %v1498 = vunpack.c.l.b16 %v1303
    %v1499 = vunpack.c.h.b16 %v1303
    %v1500 = vunpack.c.l.b16 %v1304
    %v1501 = vunpack.c.h.b16 %v1304
    %v1502 = vunpack.c.l.b16 %v1305
    %v1503 = vunpack.c.h.b16 %v1305
    %v1504 = vunpack.c.l.b16 %v1306
    %v1505 = vunpack.c.h.b16 %v1306
    %v1506 = vunpack.c.l.b16 %v1307
    %v1507 = vunpack.c.h.b16 %v1307
    %v1508 = vunpack.c.l.b16 %v1308
    %v1509 = vunpack.c.h.b16 %v1308
    %v1510 = vunpack.c.l.b16 %v1309
    %v1511 = vunpack.c.h.b16 %v1309
    %v1512 = vunpack.c.l.b16 %v1310
    %v1513 = vunpack.c.h.b16 %v1310
    %v1514 = vpack.c.b16 %v1388, %v1386
    %v1515 = vpack.c.b16 %v1389, %v1387
    %v1516 = vpack.c.b16 %v1392, %v1390
    %v1517 = vpack.c.b16 %v1393, %v1391
    %v1518 = vpack.c.b16 %v1396, %v1394
    %v1519 = vpack.c.b16 %v1397, %v1395
    %v1520 = vpack.c.b16 %v1400, %v1398
    %v1521 = vpack.c.b16 %v1401, %v1399
    %v1522 = vpack.c.b16 %v1404, %v1402
    %v1523 = vpack.c.b16 %v1405, %v1403
    %v1524 = vpack.c.b16 %v1408, %v1406
    %v1525 = vpack.c.b16 %v1409, %v1407
    %v1526 = vpack.c.b16 %v1412, %v1410
    %v1527 = vpack.c.b16 %v1413, %v1411
    %v1528 = vpack.c.b16 %v1416, %v1414
    %v1529 = vpack.c.b16 %v1417, %v1415
    %v1530 = vpack.c.b16 %v1420, %v1418
    %v1531 = vpack.c.b16 %v1421, %v1419
    %v1532 = vpack.c.b16 %v1424, %v1422
    %v1533 = vpack.c.b16 %v1425, %v1423
    %v1534 = vpack.c.b16 %v1428, %v1426
    %v1535 = vpack.c.b16 %v1429, %v1427
    %v1536 = vpack.c.b16 %v1432, %v1430
    %v1537 = vpack.c.b16 %v1433, %v1431
    %v1538 = vpack.c.b16 %v1436, %v1434
    %v1539 = vpack.c.b16 %v1437, %v1435
    %v1540 = vpack.c.b16 %v1440, %v1438
    %v1541 = vpack.c.b16 %v1441, %v1439
    %v1542 = vpack.c.b16 %v1444, %v1442
    %v1543 = vpack.c.b16 %v1445, %v1443
    %v1544 = vpack.c.b16 %v1448, %v1446
    %v1545 = vpack.c.b16 %v1449, %v1447
    %v1546 = vpack.c.b16 %v1452, %v1450
    %v1547 = vpack.c.b16 %v1453, %v1451
    %v1548 = vpack.c.b16 %v1456, %v1454
    %v1549 = vpack.c.b16 %v1457, %v1455
    %v1550 = vpack.c.b16 %v1460, %v1458
    %v1551 = vpack.c.b16 %v1461, %v1459
    %v1552 = vpack.c.b16 %v1464, %v1462
    %v1553 = vpack.c.b16 %v1465, %v1463
    %v1554 = vpack.c.b16 %v1468, %v1466
    %v1555 = vpack.c.b16 %v1469, %v1467
    %v1556 = vpack.c.b16 %v1472, %v1470
    %v1557 = vpack.c.b16 %v1473, %v1471
    %v1558 = vpack.c.b16 %v1476, %v1474
    %v1559 = vpack.c.b16 %v1477, %v1475
    %v1560 = vpack.c.b16 %v1480, %v1478
    %v1561 = vpack.c.b16 %v1481, %v1479
    %v1562 = vpack.c.b16 %v1484, %v1482
    %v1563 = vpack.c.b16 %v1485, %v1483
    %v1564 = vpack.c.b16 %v1488, %v1486
    %v1565 = vpack.c.b16 %v1489, %v1487
    %v1566 = vpack.c.b16 %v1492, %v1490
    %v1567 = vpack.c.b16 %v1493, %v1491
    %v1568 = vpack.c.b16 %v1496, %v1494
    %v1569 = vpack.c.b16 %v1497, %v1495
    %v1570 = vpack.c.b16 %v1500, %v1498
    %v1571 = vpack.c.b16 %v1501, %v1499
    %v1572 = vpack.c.b16 %v1504, %v1502
    %v1573 = vpack.c.b16 %v1505, %v1503
    %v1574 = vpack.c.b16 %v1508, %v1506
    %v1575 = vpack.c.b16 %v1509, %v1507
    %v1576 = vpack.c.b16 %v1512, %v1510
    %v1577 = vpack.c.b16 %v1513, %v1511
    %1642 = vmatprep.subr.bf16.mxu0 %v1515
    %1643 = vmatpush1.bf16.msra.mxu0 %v1514
    %1644 = vmatprep.subr.bf16.mxu0 %v1517
    %1645 = vmatpush1.bf16.msra.mxu0 %v1516
    %1646 = vmatprep.subr.bf16.mxu0 %v1519
    %1647 = vmatpush1.bf16.msra.mxu0 %v1518
    %1648 = vmatprep.subr.bf16.mxu0 %v1521
    %1649 = vmatpush1.bf16.msra.mxu0 %v1520
    %1650 = vmatprep.subr.bf16.mxu0 %v1523
    %1651 = vmatpush1.bf16.msra.mxu0 %v1522
    %1652 = vmatprep.subr.bf16.mxu0 %v1525
    %1653 = vmatpush1.bf16.msra.mxu0 %v1524
    %1654 = vmatprep.subr.bf16.mxu0 %v1527
    %1655 = vmatpush1.bf16.msra.mxu0 %v1526
    %1656 = vmatprep.subr.bf16.mxu0 %v1529
    %1657 = vmatpush1.bf16.msra.mxu0 %v1528
    %1658 = vmatprep.subr.bf16.mxu0 %v1531
    %1659 = vmatpush1.bf16.msra.mxu0 %v1530
    %1660 = vmatprep.subr.bf16.mxu0 %v1533
    %1661 = vmatpush1.bf16.msra.mxu0 %v1532
    %1662 = vmatprep.subr.bf16.mxu0 %v1535
    %1663 = vmatpush1.bf16.msra.mxu0 %v1534
    %1664 = vmatprep.subr.bf16.mxu0 %v1537
    %1665 = vmatpush1.bf16.msra.mxu0 %v1536
    %1666 = vmatprep.subr.bf16.mxu0 %v1539
    %1667 = vmatpush1.bf16.msra.mxu0 %v1538
    %1668 = vmatprep.subr.bf16.mxu0 %v1541
    %1669 = vmatpush1.bf16.msra.mxu0 %v1540
    %1670 = vmatprep.subr.bf16.mxu0 %v1543
    %1671 = vmatpush1.bf16.msra.mxu0 %v1542
    %1672 = vmatprep.subr.bf16.mxu0 %v1545
    %1673 = vmatpush1.bf16.msra.mxu0 %v1544
    %1674 = vmatprep.mubr.bf16.mxu0 %v1239
    %1675 = vmatmul.mubr.bf16.gmra.mrb[0].mxu0 %v1238
    %v1676 = vpop.f32.mrb[0].mxu0
    %v1677 = vadd.f32 %v1315, %v1676
    %v1678 = vpop.f32.mrb[0].mxu0
    %v1679 = vadd.f32 %v1319, %v1678
    %v1680 = vpop.f32.mrb[0].mxu0
    %v1681 = vadd.f32 %v1315, %v1680
    %v1682 = vpop.f32.mrb[0].mxu0
    %v1683 = vadd.f32 %v1319, %v1682
    %1684 = vmatprep.mubr.bf16.mxu0 %v1243
    %1685 = vmatmul.mubr.bf16.gmra.mrb[0].mxu0 %v1242
    %v1686 = vpop.f32.mrb[0].mxu0
    %v1687 = vadd.f32 %v1315, %v1686
    %v1688 = vpop.f32.mrb[0].mxu0
    %v1689 = vadd.f32 %v1319, %v1688
    %v1690 = vpop.f32.mrb[0].mxu0
    %v1691 = vadd.f32 %v1315, %v1690
    %v1692 = vpop.f32.mrb[0].mxu0
    %v1693 = vadd.f32 %v1319, %v1692
    %1694 = vdwg.mxu0
    %1695 = vmatprep.subr.bf16.mxu0 %v1547
    %1696 = vmatpush1.bf16.msra.mxu0 %v1546
    %1697 = vmatprep.subr.bf16.mxu0 %v1549
    %1698 = vmatpush1.bf16.msra.mxu0 %v1548
    %1699 = vmatprep.subr.bf16.mxu0 %v1551
    %1700 = vmatpush1.bf16.msra.mxu0 %v1550
    %1701 = vmatprep.subr.bf16.mxu0 %v1553
    %1702 = vmatpush1.bf16.msra.mxu0 %v1552
    %1703 = vmatprep.subr.bf16.mxu0 %v1555
    %1704 = vmatpush1.bf16.msra.mxu0 %v1554
    %1705 = vmatprep.subr.bf16.mxu0 %v1557
    %1706 = vmatpush1.bf16.msra.mxu0 %v1556
    %1707 = vmatprep.subr.bf16.mxu0 %v1559
    %1708 = vmatpush1.bf16.msra.mxu0 %v1558
    %1709 = vmatprep.subr.bf16.mxu0 %v1561
    %1710 = vmatpush1.bf16.msra.mxu0 %v1560
    %1711 = vmatprep.subr.bf16.mxu0 %v1563
    %1712 = vmatpush1.bf16.msra.mxu0 %v1562
    %1713 = vmatprep.subr.bf16.mxu0 %v1565
    %1714 = vmatpush1.bf16.msra.mxu0 %v1564
    %1715 = vmatprep.subr.bf16.mxu0 %v1567
    %1716 = vmatpush1.bf16.msra.mxu0 %v1566
    %1717 = vmatprep.subr.bf16.mxu0 %v1569
    %1718 = vmatpush1.bf16.msra.mxu0 %v1568
    %1719 = vmatprep.subr.bf16.mxu0 %v1571
    %1720 = vmatpush1.bf16.msra.mxu0 %v1570
    %1721 = vmatprep.subr.bf16.mxu0 %v1573
    %1722 = vmatpush1.bf16.msra.mxu0 %v1572
    %1723 = vmatprep.subr.bf16.mxu0 %v1575
    %1724 = vmatpush1.bf16.msra.mxu0 %v1574
    %1725 = vmatprep.subr.bf16.mxu0 %v1577
    %1726 = vmatpush1.bf16.msra.mxu0 %v1576
    %1727 = vmatprep.mubr.bf16.mxu0 %v1241
    %1728 = vmatmul.mubr.bf16.gmra.mrb[0].mxu0 %v1240
    %v1729 = vpop.f32.mrb[0].mxu0
    %v1730 = vadd.f32 %v1677, %v1729
    %v1731 = vpop.f32.mrb[0].mxu0
    %v1732 = vadd.f32 %v1679, %v1731
    %v1733 = vpop.f32.mrb[0].mxu0
    %v1734 = vadd.f32 %v1681, %v1733
    %v1735 = vpop.f32.mrb[0].mxu0
    %v1736 = vadd.f32 %v1683, %v1735
    %1737 = vmatprep.mubr.bf16.mxu0 %v1245
    %1738 = vmatmul.mubr.bf16.gmra.mrb[0].mxu0 %v1244
    %v1739 = vpop.f32.mrb[0].mxu0
    %v1740 = vadd.f32 %v1687, %v1739
    %v1741 = vpop.f32.mrb[0].mxu0
    %v1742 = vadd.f32 %v1689, %v1741
    %v1743 = vpop.f32.mrb[0].mxu0
    %v1744 = vadd.f32 %v1691, %v1743
    %v1745 = vpop.f32.mrb[0].mxu0
    %v1746 = vadd.f32 %v1693, %v1745
    %1747 = vdwg.mxu0
    %vm1748 = vcmp.gt.f32.partialorder %v1730, 0.0
    %vm1749 = vcmp.gt.f32.partialorder %v1732, 0.0
    %vm1750 = vcmp.gt.f32.partialorder %v1734, 0.0
    %vm1751 = vcmp.gt.f32.partialorder %v1736, 0.0
    %vm1752 = vcmp.gt.f32.partialorder %v1740, 0.0
    %vm1753 = vcmp.gt.f32.partialorder %v1742, 0.0
    %vm1754 = vcmp.gt.f32.partialorder %v1744, 0.0
    %vm1755 = vcmp.gt.f32.partialorder %v1746, 0.0
    %v1756 = vmul.f32 %v1730, 0.1
    %v1757 = vmul.f32 %v1732, 0.1
    %v1758 = vmul.f32 %v1734, 0.1
    %v1759 = vmul.f32 %v1736, 0.1
    %v1760 = vmul.f32 %v1740, 0.1
    %v1761 = vmul.f32 %v1742, 0.1
    %v1762 = vmul.f32 %v1744, 0.1
    %v1763 = vmul.f32 %v1746, 0.1
    %v1764 = vsel %vm1748, %v1730, %v1756
    %v1765 = vsel %vm1749, %v1732, %v1757
    %v1766 = vsel %vm1750, %v1734, %v1758
    %v1767 = vsel %vm1751, %v1736, %v1759
    %v1768 = vsel %vm1752, %v1740, %v1760
    %v1769 = vsel %vm1753, %v1742, %v1761
    %v1770 = vsel %vm1754, %v1744, %v1762
    %v1771 = vsel %vm1755, %v1746, %v1763
    %v1772 = vpack.c.bf16 %v1766, %v1764
    %v1773 = vpack.c.bf16 %v1767, %v1765
    %v1774 = vpack.c.bf16 %v1770, %v1768
    %v1775 = vpack.c.bf16 %v1771, %v1769
    %v1776 = vld [vmem:[#allocation7 + $0x6] sm:$0x3]
    %v1777 = vld [vmem:[#allocation12] sm:$0xff]
    %v1778 = vld [vmem:[#allocation12 + $0x8] sm:$0xff]
    %v1779 = vld [vmem:[#allocation12 + $0x10] sm:$0xff]
    %v1780 = vld [vmem:[#allocation12 + $0x18] sm:$0xff]
    %v1781 = vld [vmem:[#allocation12 + $0x20] sm:$0xff]
    %v1782 = vld [vmem:[#allocation12 + $0x28] sm:$0xff]
    %v1783 = vld [vmem:[#allocation12 + $0x30] sm:$0xff]
    %v1784 = vld [vmem:[#allocation12 + $0x38] sm:$0xff]
    %v1785 = vld [vmem:[#allocation12 + $0x40] sm:$0xff]
    %v1786 = vld [vmem:[#allocation12 + $0x48] sm:$0xff]
    %v1787 = vld [vmem:[#allocation12 + $0x50] sm:$0xff]
    %v1788 = vld [vmem:[#allocation12 + $0x58] sm:$0xff]
    %v1789 = vld [vmem:[#allocation12 + $0x60] sm:$0xff]
    %v1790 = vld [vmem:[#allocation12 + $0x68] sm:$0xff]
    %v1791 = vld [vmem:[#allocation12 + $0x70] sm:$0xff]
    %v1792 = vld [vmem:[#allocation12 + $0x78] sm:$0xff]
    %v1793 = vld [vmem:[#allocation12 + $0x80] sm:$0xff]
    %v1794 = vld [vmem:[#allocation12 + $0x88] sm:$0xff]
    %v1795 = vld [vmem:[#allocation12 + $0x90] sm:$0xff]
    %v1796 = vld [vmem:[#allocation12 + $0x98] sm:$0xff]
    %v1797 = vld [vmem:[#allocation12 + $0xa0] sm:$0xff]
    %v1798 = vld [vmem:[#allocation12 + $0xa8] sm:$0xff]
    %v1799 = vld [vmem:[#allocation12 + $0xb0] sm:$0xff]
    %v1800 = vld [vmem:[#allocation12 + $0xb8] sm:$0xff]
    %v1801 = vld [vmem:[#allocation12 + $0xc0] sm:$0xff]
    %v1802 = vld [vmem:[#allocation12 + $0xc8] sm:$0xff]
    %v1803 = vld [vmem:[#allocation12 + $0xd0] sm:$0xff]
    %v1804 = vld [vmem:[#allocation12 + $0xd8] sm:$0xff]
    %v1805 = vld [vmem:[#allocation12 + $0xe0] sm:$0xff]
    %v1806 = vld [vmem:[#allocation12 + $0xe8] sm:$0xff]
    %v1807 = vld [vmem:[#allocation12 + $0xf0] sm:$0xff]
    %v1808 = vld [vmem:[#allocation12 + $0xf8] sm:$0xff]
    %v1810 = vlaneseq
    %v1811 = vshrl.u32 %v1810, 7
    %v1812 = vsub.s32 0, %v1811
    %v1813 = vrot.slane %v1776, %v1812
    %v1814 = vlaneseq
    %v1815 = vshrl.u32 %v1814, 7
    %v1816 = vsub.s32 1, %v1815
    %v1817 = vrot.slane %v1776, %v1816
    %v1852 = vunpack.c.l.b16 %v1777
    %v1853 = vunpack.c.h.b16 %v1777
    %v1854 = vunpack.c.l.b16 %v1778
    %v1855 = vunpack.c.h.b16 %v1778
    %v1856 = vunpack.c.l.b16 %v1779
    %v1857 = vunpack.c.h.b16 %v1779
    %v1858 = vunpack.c.l.b16 %v1780
    %v1859 = vunpack.c.h.b16 %v1780
    %v1860 = vunpack.c.l.b16 %v1781
    %v1861 = vunpack.c.h.b16 %v1781
    %v1862 = vunpack.c.l.b16 %v1782
    %v1863 = vunpack.c.h.b16 %v1782
    %v1864 = vunpack.c.l.b16 %v1783
    %v1865 = vunpack.c.h.b16 %v1783
    %v1866 = vunpack.c.l.b16 %v1784
    %v1867 = vunpack.c.h.b16 %v1784
    %v1868 = vunpack.c.l.b16 %v1785
    %v1869 = vunpack.c.h.b16 %v1785
    %v1870 = vunpack.c.l.b16 %v1786
    %v1871 = vunpack.c.h.b16 %v1786
    %v1872 = vunpack.c.l.b16 %v1787
    %v1873 = vunpack.c.h.b16 %v1787
    %v1874 = vunpack.c.l.b16 %v1788
    %v1875 = vunpack.c.h.b16 %v1788
    %v1876 = vunpack.c.l.b16 %v1789
    %v1877 = vunpack.c.h.b16 %v1789
    %v1878 = vunpack.c.l.b16 %v1790
    %v1879 = vunpack.c.h.b16 %v1790
    %v1880 = vunpack.c.l.b16 %v1791
    %v1881 = vunpack.c.h.b16 %v1791
    %v1882 = vunpack.c.l.b16 %v1792
    %v1883 = vunpack.c.h.b16 %v1792
    %v1884 = vunpack.c.l.b16 %v1793
    %v1885 = vunpack.c.h.b16 %v1793
    %v1886 = vunpack.c.l.b16 %v1794
    %v1887 = vunpack.c.h.b16 %v1794
    %v1888 = vunpack.c.l.b16 %v1795
    %v1889 = vunpack.c.h.b16 %v1795
    %v1890 = vunpack.c.l.b16 %v1796
    %v1891 = vunpack.c.h.b16 %v1796
    %v1892 = vunpack.c.l.b16 %v1797
    %v1893 = vunpack.c.h.b16 %v1797
    %v1894 = vunpack.c.l.b16 %v1798
    %v1895 = vunpack.c.h.b16 %v1798
    %v1896 = vunpack.c.l.b16 %v1799
    %v1897 = vunpack.c.h.b16 %v1799
    %v1898 = vunpack.c.l.b16 %v1800
    %v1899 = vunpack.c.h.b16 %v1800
    %v1900 = vunpack.c.l.b16 %v1801
    %v1901 = vunpack.c.h.b16 %v1801
    %v1902 = vunpack.c.l.b16 %v1802
    %v1903 = vunpack.c.h.b16 %v1802
    %v1904 = vunpack.c.l.b16 %v1803
    %v1905 = vunpack.c.h.b16 %v1803
    %v1906 = vunpack.c.l.b16 %v1804
    %v1907 = vunpack.c.h.b16 %v1804
    %v1908 = vunpack.c.l.b16 %v1805
    %v1909 = vunpack.c.h.b16 %v1805
    %v1910 = vunpack.c.l.b16 %v1806
    %v1911 = vunpack.c.h.b16 %v1806
    %v1912 = vunpack.c.l.b16 %v1807
    %v1913 = vunpack.c.h.b16 %v1807
    %v1914 = vunpack.c.l.b16 %v1808
    %v1915 = vunpack.c.h.b16 %v1808
    %v1916 = vpack.c.b16 %v1854, %v1852
    %v1917 = vpack.c.b16 %v1855, %v1853
    %v1918 = vpack.c.b16 %v1858, %v1856
    %v1919 = vpack.c.b16 %v1859, %v1857
    %v1920 = vpack.c.b16 %v1862, %v1860
    %v1921 = vpack.c.b16 %v1863, %v1861
    %v1922 = vpack.c.b16 %v1866, %v1864
    %v1923 = vpack.c.b16 %v1867, %v1865
    %v1924 = vpack.c.b16 %v1870, %v1868
    %v1925 = vpack.c.b16 %v1871, %v1869
    %v1926 = vpack.c.b16 %v1874, %v1872
    %v1927 = vpack.c.b16 %v1875, %v1873
    %v1928 = vpack.c.b16 %v1878, %v1876
    %v1929 = vpack.c.b16 %v1879, %v1877
    %v1930 = vpack.c.b16 %v1882, %v1880
    %v1931 = vpack.c.b16 %v1883, %v1881
    %v1932 = vpack.c.b16 %v1886, %v1884
    %v1933 = vpack.c.b16 %v1887, %v1885
    %v1934 = vpack.c.b16 %v1890, %v1888
    %v1935 = vpack.c.b16 %v1891, %v1889
    %v1936 = vpack.c.b16 %v1894, %v1892
    %v1937 = vpack.c.b16 %v1895, %v1893
    %v1938 = vpack.c.b16 %v1898, %v1896
    %v1939 = vpack.c.b16 %v1899, %v1897
    %v1940 = vpack.c.b16 %v1902, %v1900
    %v1941 = vpack.c.b16 %v1903, %v1901
    %v1942 = vpack.c.b16 %v1906, %v1904
    %v1943 = vpack.c.b16 %v1907, %v1905
    %v1944 = vpack.c.b16 %v1910, %v1908
    %v1945 = vpack.c.b16 %v1911, %v1909
    %v1946 = vpack.c.b16 %v1914, %v1912
    %v1947 = vpack.c.b16 %v1915, %v1913
    %1980 = vmatprep.subr.bf16.mxu0 %v1917
    %1981 = vmatpush1.bf16.msra.mxu0 %v1916
    %1982 = vmatprep.subr.bf16.mxu0 %v1919
    %1983 = vmatpush1.bf16.msra.mxu0 %v1918
    %1984 = vmatprep.subr.bf16.mxu0 %v1921
    %1985 = vmatpush1.bf16.msra.mxu0 %v1920
    %1986 = vmatprep.subr.bf16.mxu0 %v1923
    %1987 = vmatpush1.bf16.msra.mxu0 %v1922
    %1988 = vmatprep.subr.bf16.mxu0 %v1925
    %1989 = vmatpush1.bf16.msra.mxu0 %v1924
    %1990 = vmatprep.subr.bf16.mxu0 %v1927
    %1991 = vmatpush1.bf16.msra.mxu0 %v1926
    %1992 = vmatprep.subr.bf16.mxu0 %v1929
    %1993 = vmatpush1.bf16.msra.mxu0 %v1928
    %1994 = vmatprep.subr.bf16.mxu0 %v1931
    %1995 = vmatpush1.bf16.msra.mxu0 %v1930
    %1996 = vmatprep.subr.bf16.mxu0 %v1933
    %1997 = vmatpush1.bf16.msra.mxu0 %v1932
    %1998 = vmatprep.subr.bf16.mxu0 %v1935
    %1999 = vmatpush1.bf16.msra.mxu0 %v1934
    %2000 = vmatprep.subr.bf16.mxu0 %v1937
    %2001 = vmatpush1.bf16.msra.mxu0 %v1936
    %2002 = vmatprep.subr.bf16.mxu0 %v1939
    %2003 = vmatpush1.bf16.msra.mxu0 %v1938
    %2004 = vmatprep.subr.bf16.mxu0 %v1941
    %2005 = vmatpush1.bf16.msra.mxu0 %v1940
    %2006 = vmatprep.subr.bf16.mxu0 %v1943
    %2007 = vmatpush1.bf16.msra.mxu0 %v1942
    %2008 = vmatprep.subr.bf16.mxu0 %v1945
    %2009 = vmatpush1.bf16.msra.mxu0 %v1944
    %2010 = vmatprep.subr.bf16.mxu0 %v1947
    %2011 = vmatpush1.bf16.msra.mxu0 %v1946
    %2012 = vmatprep.mubr.bf16.mxu0 %v1773
    %2013 = vmatmul.mubr.bf16.gmra.mrb[0].mxu0 %v1772
    %v2014 = vpop.f32.mrb[0].mxu0
    %v2015 = vadd.f32 %v1813, %v2014
    %v2016 = vpop.f32.mrb[0].mxu0
    %v2017 = vadd.f32 %v1817, %v2016
    %v2018 = vpop.f32.mrb[0].mxu0
    %v2019 = vadd.f32 %v1813, %v2018
    %v2020 = vpop.f32.mrb[0].mxu0
    %v2021 = vadd.f32 %v1817, %v2020
    %2022 = vmatprep.mubr.bf16.mxu0 %v1775
    %2023 = vmatmul.mubr.bf16.gmra.mrb[0].mxu0 %v1774
    %v2024 = vpop.f32.mrb[0].mxu0
    %v2025 = vadd.f32 %v1813, %v2024
    %v2026 = vpop.f32.mrb[0].mxu0
    %v2027 = vadd.f32 %v1817, %v2026
    %v2028 = vpop.f32.mrb[0].mxu0
    %v2029 = vadd.f32 %v1813, %v2028
    %v2030 = vpop.f32.mrb[0].mxu0
    %v2031 = vadd.f32 %v1817, %v2030
    %2032 = vdwg.mxu0
    %vm2033 = vcmp.gt.f32.partialorder %v2015, 0.0
    %vm2034 = vcmp.gt.f32.partialorder %v2017, 0.0
    %vm2035 = vcmp.gt.f32.partialorder %v2019, 0.0
    %vm2036 = vcmp.gt.f32.partialorder %v2021, 0.0
    %vm2037 = vcmp.gt.f32.partialorder %v2025, 0.0
    %vm2038 = vcmp.gt.f32.partialorder %v2027, 0.0
    %vm2039 = vcmp.gt.f32.partialorder %v2029, 0.0
    %vm2040 = vcmp.gt.f32.partialorder %v2031, 0.0
    %v2041 = vmul.f32 %v2015, 0.1
    %v2042 = vmul.f32 %v2017, 0.1
    %v2043 = vmul.f32 %v2019, 0.1
    %v2044 = vmul.f32 %v2021, 0.1
    %v2045 = vmul.f32 %v2025, 0.1
    %v2046 = vmul.f32 %v2027, 0.1
    %v2047 = vmul.f32 %v2029, 0.1
    %v2048 = vmul.f32 %v2031, 0.1
    %v2049 = vsel %vm2033, %v2015, %v2041
    %v2050 = vsel %vm2034, %v2017, %v2042
    %v2051 = vsel %vm2035, %v2019, %v2043
    %v2052 = vsel %vm2036, %v2021, %v2044
    %v2053 = vsel %vm2037, %v2025, %v2045
    %v2054 = vsel %vm2038, %v2027, %v2046
    %v2055 = vsel %vm2039, %v2029, %v2047
    %v2056 = vsel %vm2040, %v2031, %v2048
    %v2057 = vpack.c.bf16 %v2051, %v2049
    %v2058 = vpack.c.bf16 %v2052, %v2050
    %v2059 = vpack.c.bf16 %v2055, %v2053
    %v2060 = vpack.c.bf16 %v2056, %v2054
    %v2061 = vld [vmem:[#allocation7 + $0x8] sm:$0x3]
    %v2062 = vld [vmem:[#allocation13] sm:$0xff]
    %v2063 = vld [vmem:[#allocation13 + $0x8] sm:$0xff]
    %v2064 = vld [vmem:[#allocation13 + $0x10] sm:$0xff]
    %v2065 = vld [vmem:[#allocation13 + $0x18] sm:$0xff]
    %v2066 = vld [vmem:[#allocation13 + $0x20] sm:$0xff]
    %v2067 = vld [vmem:[#allocation13 + $0x28] sm:$0xff]
    %v2068 = vld [vmem:[#allocation13 + $0x30] sm:$0xff]
    %v2069 = vld [vmem:[#allocation13 + $0x38] sm:$0xff]
    %v2070 = vld [vmem:[#allocation13 + $0x40] sm:$0xff]
    %v2071 = vld [vmem:[#allocation13 + $0x48] sm:$0xff]
    %v2072 = vld [vmem:[#allocation13 + $0x50] sm:$0xff]
    %v2073 = vld [vmem:[#allocation13 + $0x58] sm:$0xff]
    %v2074 = vld [vmem:[#allocation13 + $0x60] sm:$0xff]
    %v2075 = vld [vmem:[#allocation13 + $0x68] sm:$0xff]
    %v2076 = vld [vmem:[#allocation13 + $0x70] sm:$0xff]
    %v2077 = vld [vmem:[#allocation13 + $0x78] sm:$0xff]
    %v2078 = vld [vmem:[#allocation13 + $0x80] sm:$0xff]
    %v2079 = vld [vmem:[#allocation13 + $0x88] sm:$0xff]
    %v2080 = vld [vmem:[#allocation13 + $0x90] sm:$0xff]
    %v2081 = vld [vmem:[#allocation13 + $0x98] sm:$0xff]
    %v2082 = vld [vmem:[#allocation13 + $0xa0] sm:$0xff]
    %v2083 = vld [vmem:[#allocation13 + $0xa8] sm:$0xff]
    %v2084 = vld [vmem:[#allocation13 + $0xb0] sm:$0xff]
    %v2085 = vld [vmem:[#allocation13 + $0xb8] sm:$0xff]
    %v2086 = vld [vmem:[#allocation13 + $0xc0] sm:$0xff]
    %v2087 = vld [vmem:[#allocation13 + $0xc8] sm:$0xff]
    %v2088 = vld [vmem:[#allocation13 + $0xd0] sm:$0xff]
    %v2089 = vld [vmem:[#allocation13 + $0xd8] sm:$0xff]
    %v2090 = vld [vmem:[#allocation13 + $0xe0] sm:$0xff]
    %v2091 = vld [vmem:[#allocation13 + $0xe8] sm:$0xff]
    %v2092 = vld [vmem:[#allocation13 + $0xf0] sm:$0xff]
    %v2093 = vld [vmem:[#allocation13 + $0xf8] sm:$0xff]
    %v2095 = vlaneseq
    %v2096 = vshrl.u32 %v2095, 7
    %v2097 = vsub.s32 0, %v2096
    %v2098 = vrot.slane %v2061, %v2097
    %v2099 = vlaneseq
    %v2100 = vshrl.u32 %v2099, 7
    %v2101 = vsub.s32 1, %v2100
    %v2102 = vrot.slane %v2061, %v2101
    %v2137 = vunpack.c.l.b16 %v2062
    %v2138 = vunpack.c.h.b16 %v2062
    %v2139 = vunpack.c.l.b16 %v2063
    %v2140 = vunpack.c.h.b16 %v2063
    %v2141 = vunpack.c.l.b16 %v2064
    %v2142 = vunpack.c.h.b16 %v2064
    %v2143 = vunpack.c.l.b16 %v2065
    %v2144 = vunpack.c.h.b16 %v2065
    %v2145 = vunpack.c.l.b16 %v2066
    %v2146 = vunpack.c.h.b16 %v2066
    %v2147 = vunpack.c.l.b16 %v2067
    %v2148 = vunpack.c.h.b16 %v2067
    %v2149 = vunpack.c.l.b16 %v2068
    %v2150 = vunpack.c.h.b16 %v2068
    %v2151 = vunpack.c.l.b16 %v2069
    %v2152 = vunpack.c.h.b16 %v2069
    %v2153 = vunpack.c.l.b16 %v2070
    %v2154 = vunpack.c.h.b16 %v2070
    %v2155 = vunpack.c.l.b16 %v2071
    %v2156 = vunpack.c.h.b16 %v2071
    %v2157 = vunpack.c.l.b16 %v2072
    %v2158 = vunpack.c.h.b16 %v2072
    %v2159 = vunpack.c.l.b16 %v2073
    %v2160 = vunpack.c.h.b16 %v2073
    %v2161 = vunpack.c.l.b16 %v2074
    %v2162 = vunpack.c.h.b16 %v2074
    %v2163 = vunpack.c.l.b16 %v2075
    %v2164 = vunpack.c.h.b16 %v2075
    %v2165 = vunpack.c.l.b16 %v2076
    %v2166 = vunpack.c.h.b16 %v2076
    %v2167 = vunpack.c.l.b16 %v2077
    %v2168 = vunpack.c.h.b16 %v2077
    %v2169 = vunpack.c.l.b16 %v2078
    %v2170 = vunpack.c.h.b16 %v2078
    %v2171 = vunpack.c.l.b16 %v2079
    %v2172 = vunpack.c.h.b16 %v2079
    %v2173 = vunpack.c.l.b16 %v2080
    %v2174 = vunpack.c.h.b16 %v2080
    %v2175 = vunpack.c.l.b16 %v2081
    %v2176 = vunpack.c.h.b16 %v2081
    %v2177 = vunpack.c.l.b16 %v2082
    %v2178 = vunpack.c.h.b16 %v2082
    %v2179 = vunpack.c.l.b16 %v2083
    %v2180 = vunpack.c.h.b16 %v2083
    %v2181 = vunpack.c.l.b16 %v2084
    %v2182 = vunpack.c.h.b16 %v2084
    %v2183 = vunpack.c.l.b16 %v2085
    %v2184 = vunpack.c.h.b16 %v2085
    %v2185 = vunpack.c.l.b16 %v2086
    %v2186 = vunpack.c.h.b16 %v2086
    %v2187 = vunpack.c.l.b16 %v2087
    %v2188 = vunpack.c.h.b16 %v2087
    %v2189 = vunpack.c.l.b16 %v2088
    %v2190 = vunpack.c.h.b16 %v2088
    %v2191 = vunpack.c.l.b16 %v2089
    %v2192 = vunpack.c.h.b16 %v2089
    %v2193 = vunpack.c.l.b16 %v2090
    %v2194 = vunpack.c.h.b16 %v2090
    %v2195 = vunpack.c.l.b16 %v2091
    %v2196 = vunpack.c.h.b16 %v2091
    %v2197 = vunpack.c.l.b16 %v2092
    %v2198 = vunpack.c.h.b16 %v2092
    %v2199 = vunpack.c.l.b16 %v2093
    %v2200 = vunpack.c.h.b16 %v2093
    %v2201 = vpack.c.b16 %v2139, %v2137
    %v2202 = vpack.c.b16 %v2140, %v2138
    %v2203 = vpack.c.b16 %v2143, %v2141
    %v2204 = vpack.c.b16 %v2144, %v2142
    %v2205 = vpack.c.b16 %v2147, %v2145
    %v2206 = vpack.c.b16 %v2148, %v2146
    %v2207 = vpack.c.b16 %v2151, %v2149
    %v2208 = vpack.c.b16 %v2152, %v2150
    %v2209 = vpack.c.b16 %v2155, %v2153
    %v2210 = vpack.c.b16 %v2156, %v2154
    %v2211 = vpack.c.b16 %v2159, %v2157
    %v2212 = vpack.c.b16 %v2160, %v2158
    %v2213 = vpack.c.b16 %v2163, %v2161
    %v2214 = vpack.c.b16 %v2164, %v2162
    %v2215 = vpack.c.b16 %v2167, %v2165
    %v2216 = vpack.c.b16 %v2168, %v2166
    %v2217 = vpack.c.b16 %v2171, %v2169
    %v2218 = vpack.c.b16 %v2172, %v2170
    %v2219 = vpack.c.b16 %v2175, %v2173
    %v2220 = vpack.c.b16 %v2176, %v2174
    %v2221 = vpack.c.b16 %v2179, %v2177
    %v2222 = vpack.c.b16 %v2180, %v2178
    %v2223 = vpack.c.b16 %v2183, %v2181
    %v2224 = vpack.c.b16 %v2184, %v2182
    %v2225 = vpack.c.b16 %v2187, %v2185
    %v2226 = vpack.c.b16 %v2188, %v2186
    %v2227 = vpack.c.b16 %v2191, %v2189
    %v2228 = vpack.c.b16 %v2192, %v2190
    %v2229 = vpack.c.b16 %v2195, %v2193
    %v2230 = vpack.c.b16 %v2196, %v2194
    %v2231 = vpack.c.b16 %v2199, %v2197
    %v2232 = vpack.c.b16 %v2200, %v2198
    %2265 = vmatprep.subr.bf16.mxu0 %v2202
    %2266 = vmatpush1.bf16.msra.mxu0 %v2201
    %2267 = vmatprep.subr.bf16.mxu0 %v2204
    %2268 = vmatpush1.bf16.msra.mxu0 %v2203
    %2269 = vmatprep.subr.bf16.mxu0 %v2206
    %2270 = vmatpush1.bf16.msra.mxu0 %v2205
    %2271 = vmatprep.subr.bf16.mxu0 %v2208
    %2272 = vmatpush1.bf16.msra.mxu0 %v2207
    %2273 = vmatprep.subr.bf16.mxu0 %v2210
    %2274 = vmatpush1.bf16.msra.mxu0 %v2209
    %2275 = vmatprep.subr.bf16.mxu0 %v2212
    %2276 = vmatpush1.bf16.msra.mxu0 %v2211
    %2277 = vmatprep.subr.bf16.mxu0 %v2214
    %2278 = vmatpush1.bf16.msra.mxu0 %v2213
    %2279 = vmatprep.subr.bf16.mxu0 %v2216
    %2280 = vmatpush1.bf16.msra.mxu0 %v2215
    %2281 = vmatprep.subr.bf16.mxu0 %v2218
    %2282 = vmatpush1.bf16.msra.mxu0 %v2217
    %2283 = vmatprep.subr.bf16.mxu0 %v2220
    %2284 = vmatpush1.bf16.msra.mxu0 %v2219
    %2285 = vmatprep.subr.bf16.mxu0 %v2222
    %2286 = vmatpush1.bf16.msra.mxu0 %v2221
    %2287 = vmatprep.subr.bf16.mxu0 %v2224
    %2288 = vmatpush1.bf16.msra.mxu0 %v2223
    %2289 = vmatprep.subr.bf16.mxu0 %v2226
    %2290 = vmatpush1.bf16.msra.mxu0 %v2225
    %2291 = vmatprep.subr.bf16.mxu0 %v2228
    %2292 = vmatpush1.bf16.msra.mxu0 %v2227
    %2293 = vmatprep.subr.bf16.mxu0 %v2230
    %2294 = vmatpush1.bf16.msra.mxu0 %v2229
    %2295 = vmatprep.subr.bf16.mxu0 %v2232
    %2296 = vmatpush1.bf16.msra.mxu0 %v2231
    %2297 = vmatprep.mubr.bf16.mxu0 %v2058
    %2298 = vmatmul.mubr.bf16.gmra.mrb[0].mxu0 %v2057
    %v2299 = vpop.f32.mrb[0].mxu0
    %v2300 = vadd.f32 %v2098, %v2299
    %v2301 = vpop.f32.mrb[0].mxu0
    %v2302 = vadd.f32 %v2102, %v2301
    %v2303 = vpop.f32.mrb[0].mxu0
    %v2304 = vadd.f32 %v2098, %v2303
    %v2305 = vpop.f32.mrb[0].mxu0
    %v2306 = vadd.f32 %v2102, %v2305
    %2307 = vmatprep.mubr.bf16.mxu0 %v2060
    %2308 = vmatmul.mubr.bf16.gmra.mrb[0].mxu0 %v2059
    %v2309 = vpop.f32.mrb[0].mxu0
    %v2310 = vadd.f32 %v2098, %v2309
    %v2311 = vpop.f32.mrb[0].mxu0
    %v2312 = vadd.f32 %v2102, %v2311
    %v2313 = vpop.f32.mrb[0].mxu0
    %v2314 = vadd.f32 %v2098, %v2313
    %v2315 = vpop.f32.mrb[0].mxu0
    %v2316 = vadd.f32 %v2102, %v2315
    %2317 = vdwg.mxu0
    %vm2318 = vcmp.gt.f32.partialorder %v2300, 0.0
    %vm2319 = vcmp.gt.f32.partialorder %v2302, 0.0
    %vm2320 = vcmp.gt.f32.partialorder %v2304, 0.0
    %vm2321 = vcmp.gt.f32.partialorder %v2306, 0.0
    %vm2322 = vcmp.gt.f32.partialorder %v2310, 0.0
    %vm2323 = vcmp.gt.f32.partialorder %v2312, 0.0
    %vm2324 = vcmp.gt.f32.partialorder %v2314, 0.0
    %vm2325 = vcmp.gt.f32.partialorder %v2316, 0.0
    %v2326 = vmul.f32 %v2300, 0.1
    %v2327 = vmul.f32 %v2302, 0.1
    %v2328 = vmul.f32 %v2304, 0.1
    %v2329 = vmul.f32 %v2306, 0.1
    %v2330 = vmul.f32 %v2310, 0.1
    %v2331 = vmul.f32 %v2312, 0.1
    %v2332 = vmul.f32 %v2314, 0.1
    %v2333 = vmul.f32 %v2316, 0.1
    %v2334 = vsel %vm2318, %v2300, %v2326
    %v2335 = vsel %vm2319, %v2302, %v2327
    %v2336 = vsel %vm2320, %v2304, %v2328
    %v2337 = vsel %vm2321, %v2306, %v2329
    %v2338 = vsel %vm2322, %v2310, %v2330
    %v2339 = vsel %vm2323, %v2312, %v2331
    %v2340 = vsel %vm2324, %v2314, %v2332
    %v2341 = vsel %vm2325, %v2316, %v2333
    %v2342 = vpack.c.bf16 %v2336, %v2334
    %v2343 = vpack.c.bf16 %v2337, %v2335
    %v2344 = vpack.c.bf16 %v2340, %v2338
    %v2345 = vpack.c.bf16 %v2341, %v2339
    %v2346 = vlaneseq
    %v2347 = vand.u32 %v2346, 127
    %v2348 = vlaneseq
    %v2349 = vshrl.u32 %v2348, 7
    %v2350 = vmul.u32 %v2349, 3
    %vm2351 = vcmp.eq.s32.totalorder %v2347, %v2350
    %s2352 = sld [smem:[#allocation6]]
    %v2353 = vstv %s2352
    %v2354 = vsel %vm2351, %v2353, 0.0
    %v2355 = vadd.f32 %v2354, 0.0
    %v2356 = vadd.s32 %v2350, 1
    %vm2357 = vcmp.eq.s32.totalorder %v2347, %v2356
    %s2358 = sld [smem:[#allocation6 + $0x1]]
    %v2359 = vstv %s2358
    %v2360 = vsel %vm2357, %v2359, 0.0
    %v2361 = vadd.f32 %v2355, %v2360
    %v2362 = vadd.s32 %v2350, 2
    %vm2363 = vcmp.eq.s32.totalorder %v2347, %v2362
    %s2364 = sld [smem:[#allocation6 + $0x2]]
    %v2365 = vstv %s2364
    %v2366 = vsel %vm2363, %v2365, 0.0
    %v2367 = vadd.f32 %v2361, %v2366
    %v2368 = vpack.c.bf16 %v2367, %v2367
    %vm2369 = vcmask 261120
    %v2371 = vsel %vm2369, %v2368, 0
    %2373 = vmatprep.subr.bf16.mxu0 %v2343
    %2374 = vmatpush1.bf16.msra.mxu0 %v2342
    %2375 = vmatprep.subr.bf16.mxu0 %v2345
    %2376 = vmatpush1.bf16.msra.mxu0 %v2344
    %2377 = vmatprep.subr.bf16.mxu0 0
    %2378 = vmatpush1.bf16.msra.mxu0 0
    %2379 = vmatprep.subr.bf16.mxu0 0
    %2380 = vmatpush1.bf16.msra.mxu0 0
    %2381 = vmatprep.subr.bf16.mxu0 0
    %2382 = vmatpush1.bf16.msra.mxu0 0
    %2383 = vmatprep.subr.bf16.mxu0 0
    %2384 = vmatpush1.bf16.msra.mxu0 0
    %2385 = vmatprep.subr.bf16.mxu0 0
    %2386 = vmatpush1.bf16.msra.mxu0 0
    %2387 = vmatprep.subr.bf16.mxu0 0
    %2388 = vmatpush1.bf16.msra.mxu0 0
    %2389 = vmatprep.subr.bf16.mxu0 0
    %2390 = vmatpush1.bf16.msra.mxu0 0
    %2391 = vmatprep.subr.bf16.mxu0 0
    %2392 = vmatpush1.bf16.msra.mxu0 0
    %2393 = vmatprep.subr.bf16.mxu0 0
    %2394 = vmatpush1.bf16.msra.mxu0 0
    %2395 = vmatprep.subr.bf16.mxu0 0
    %2396 = vmatpush1.bf16.msra.mxu0 0
    %2397 = vmatprep.subr.bf16.mxu0 0
    %2398 = vmatpush1.bf16.msra.mxu0 0
    %2399 = vmatprep.subr.bf16.mxu0 0
    %2400 = vmatpush1.bf16.msra.mxu0 0
    %2401 = vmatprep.subr.bf16.mxu0 0
    %2402 = vmatpush1.bf16.msra.mxu0 0
    %2403 = vmatprep.subr.bf16.mxu0 0
    %2404 = vmatpush1.bf16.msra.mxu0 0
    %2405 = vmatprep.mubr.bf16.mxu0 0
    %2406 = vmatmul.mubr.bf16.gmra.mrb[0].mxu0 %v2371
    %v2407 = vpop.f32.mrb[0].mxu0
    %v2408 = vadd.f32 0.0, %v2407
    %v2409 = vpop.f32.mrb[0].mxu0
    %v2410 = vadd.f32 0.0, %v2409
    %v2411 = vpop.f32.mrb[0].mxu0
    %v2412 = vpop.f32.mrb[0].mxu0
    %2413 = vdwg.mxu0
    %v2414 = vpack.c.bf16 %v2408, %v2408
    %v2415 = vpack.c.bf16 %v2410, %v2410
    %v2416 = vld [vmem:[#allocation15] sm:$0xf]
    %v2417 = vld [vmem:[#allocation15 + $0x4] sm:$0xf]
    %v2418 = vld [vmem:[#allocation15 + $0x8] sm:$0xf]
    %v2419 = vld [vmem:[#allocation15 + $0xc] sm:$0xf]
    %v2420 = vld [vmem:[#allocation15 + $0x10] sm:$0xf]
    %v2421 = vld [vmem:[#allocation15 + $0x14] sm:$0xf]
    %v2422 = vld [vmem:[#allocation15 + $0x18] sm:$0xf]
    %v2423 = vld [vmem:[#allocation15 + $0x1c] sm:$0xf]
    %v2424 = vld [vmem:[#allocation15 + $0x20] sm:$0xf]
    %v2425 = vld [vmem:[#allocation15 + $0x24] sm:$0xf]
    %v2426 = vld [vmem:[#allocation15 + $0x28] sm:$0xf]
    %v2427 = vld [vmem:[#allocation15 + $0x2c] sm:$0xf]
    %v2428 = vld [vmem:[#allocation15 + $0x30] sm:$0xf]
    %v2429 = vld [vmem:[#allocation15 + $0x34] sm:$0xf]
    %v2430 = vld [vmem:[#allocation15 + $0x38] sm:$0xf]
    %v2431 = vld [vmem:[#allocation15 + $0x3c] sm:$0xf]
    %v2432 = vld [vmem:[#allocation15 + $0x40] sm:$0xf]
    %v2433 = vld [vmem:[#allocation15 + $0x44] sm:$0xf]
    %v2434 = vld [vmem:[#allocation15 + $0x48] sm:$0xf]
    %v2435 = vld [vmem:[#allocation15 + $0x4c] sm:$0xf]
    %v2436 = vld [vmem:[#allocation15 + $0x50] sm:$0xf]
    %v2437 = vld [vmem:[#allocation15 + $0x54] sm:$0xf]
    %v2438 = vld [vmem:[#allocation15 + $0x58] sm:$0xf]
    %v2439 = vld [vmem:[#allocation15 + $0x5c] sm:$0xf]
    %v2440 = vld [vmem:[#allocation15 + $0x60] sm:$0xf]
    %v2441 = vld [vmem:[#allocation15 + $0x64] sm:$0xf]
    %v2442 = vld [vmem:[#allocation15 + $0x68] sm:$0xf]
    %v2443 = vld [vmem:[#allocation15 + $0x6c] sm:$0xf]
    %v2444 = vld [vmem:[#allocation15 + $0x70] sm:$0xf]
    %v2445 = vld [vmem:[#allocation15 + $0x74] sm:$0xf]
    %v2446 = vld [vmem:[#allocation15 + $0x78] sm:$0xf]
    %v2447 = vld [vmem:[#allocation15 + $0x7c] sm:$0xf]
    %v2448 = vld [vmem:[%s3] sm:$0x1]
    %v2450 = vlaneseq
    %v2451 = vshrl.u32 %v2450, 7
    %v2452 = vsub.s32 0, %v2451
    %v2453 = vrot.slane %v2448, %v2452
    %v2487 = vunpack.c.l.b16 %v2416
    %v2488 = vunpack.c.l.b16 %v2417
    %v2489 = vunpack.c.l.b16 %v2418
    %v2490 = vunpack.c.l.b16 %v2419
    %v2491 = vunpack.c.l.b16 %v2420
    %v2492 = vunpack.c.l.b16 %v2421
    %v2493 = vunpack.c.l.b16 %v2422
    %v2494 = vunpack.c.l.b16 %v2423
    %v2495 = vunpack.c.l.b16 %v2424
    %v2496 = vunpack.c.l.b16 %v2425
    %v2497 = vunpack.c.l.b16 %v2426
    %v2498 = vunpack.c.l.b16 %v2427
    %v2499 = vunpack.c.l.b16 %v2428
    %v2500 = vunpack.c.l.b16 %v2429
    %v2501 = vunpack.c.l.b16 %v2430
    %v2502 = vunpack.c.l.b16 %v2431
    %v2503 = vunpack.c.l.b16 %v2432
    %v2504 = vunpack.c.l.b16 %v2433
    %v2505 = vunpack.c.l.b16 %v2434
    %v2506 = vunpack.c.l.b16 %v2435
    %v2507 = vunpack.c.l.b16 %v2436
    %v2508 = vunpack.c.l.b16 %v2437
    %v2509 = vunpack.c.l.b16 %v2438
    %v2510 = vunpack.c.l.b16 %v2439
    %v2511 = vunpack.c.l.b16 %v2440
    %v2512 = vunpack.c.l.b16 %v2441
    %v2513 = vunpack.c.l.b16 %v2442
    %v2514 = vunpack.c.l.b16 %v2443
    %v2515 = vunpack.c.l.b16 %v2444
    %v2516 = vunpack.c.l.b16 %v2445
    %v2517 = vunpack.c.l.b16 %v2446
    %v2518 = vunpack.c.l.b16 %v2447
    %v2519 = vpack.c.b16 %v2488, %v2487
    %v2520 = vpack.c.b16 %v2490, %v2489
    %v2521 = vpack.c.b16 %v2492, %v2491
    %v2522 = vpack.c.b16 %v2494, %v2493
    %v2523 = vpack.c.b16 %v2496, %v2495
    %v2524 = vpack.c.b16 %v2498, %v2497
    %v2525 = vpack.c.b16 %v2500, %v2499
    %v2526 = vpack.c.b16 %v2502, %v2501
    %v2527 = vpack.c.b16 %v2504, %v2503
    %v2528 = vpack.c.b16 %v2506, %v2505
    %v2529 = vpack.c.b16 %v2508, %v2507
    %v2530 = vpack.c.b16 %v2510, %v2509
    %v2531 = vpack.c.b16 %v2512, %v2511
    %v2532 = vpack.c.b16 %v2514, %v2513
    %v2533 = vpack.c.b16 %v2516, %v2515
    %v2534 = vpack.c.b16 %v2518, %v2517
    %2551 = vmatprep.subr.bf16.mxu0 0
    %2552 = vmatpush1.bf16.msra.mxu0 %v2519
    %2553 = vmatprep.subr.bf16.mxu0 0
    %2554 = vmatpush1.bf16.msra.mxu0 %v2520
    %2555 = vmatprep.subr.bf16.mxu0 0
    %2556 = vmatpush1.bf16.msra.mxu0 %v2521
    %2557 = vmatprep.subr.bf16.mxu0 0
    %2558 = vmatpush1.bf16.msra.mxu0 %v2522
    %2559 = vmatprep.subr.bf16.mxu0 0
    %2560 = vmatpush1.bf16.msra.mxu0 %v2523
    %2561 = vmatprep.subr.bf16.mxu0 0
    %2562 = vmatpush1.bf16.msra.mxu0 %v2524
    %2563 = vmatprep.subr.bf16.mxu0 0
    %2564 = vmatpush1.bf16.msra.mxu0 %v2525
    %2565 = vmatprep.subr.bf16.mxu0 0
    %2566 = vmatpush1.bf16.msra.mxu0 %v2526
    %2567 = vmatprep.subr.bf16.mxu0 0
    %2568 = vmatpush1.bf16.msra.mxu0 %v2527
    %2569 = vmatprep.subr.bf16.mxu0 0
    %2570 = vmatpush1.bf16.msra.mxu0 %v2528
    %2571 = vmatprep.subr.bf16.mxu0 0
    %2572 = vmatpush1.bf16.msra.mxu0 %v2529
    %2573 = vmatprep.subr.bf16.mxu0 0
    %2574 = vmatpush1.bf16.msra.mxu0 %v2530
    %2575 = vmatprep.subr.bf16.mxu0 0
    %2576 = vmatpush1.bf16.msra.mxu0 %v2531
    %2577 = vmatprep.subr.bf16.mxu0 0
    %2578 = vmatpush1.bf16.msra.mxu0 %v2532
    %2579 = vmatprep.subr.bf16.mxu0 0
    %2580 = vmatpush1.bf16.msra.mxu0 %v2533
    %2581 = vmatprep.subr.bf16.mxu0 0
    %2582 = vmatpush1.bf16.msra.mxu0 %v2534
    %2583 = vmatprep.mubr.bf16.mxu0 %v2415
    %2584 = vmatmul.mubr.bf16.gmra.mrb[0].mxu0 %v2414
    %v2585 = vpop.f32.mrb[0].mxu0
    %v2586 = vadd.f32 %v2453, %v2585
    %v2587 = vpop.f32.mrb[0].mxu0
    %v2588 = vpop.f32.mrb[0].mxu0
    %v2589 = vpop.f32.mrb[0].mxu0
    %2590 = vdwg.mxu0
    %2591 = vst [vmem:[#allocation16] sm:$0xff] %v2586
    // Predicated region
    $region70: #{tpu_custom_call.1} parent=1 // pred_check
      _
    $region71: #{tpu_custom_call.1} parent=1 // pred_check_branch
      %2593 = sbr.rel (0) target = $region73
    $region72: #{tpu_custom_call.1} parent=1 // pred_region
      %s2595 = ssub.s32 128, 128
      %2596 = vsyncadd [#allocation4], %s2595
      %s2598 = sshll.u32 [#allocation16], 4
      %s2599 = int_to_ptr.vmem [resolvable:$true] %s2598
      %2601 = dma.vmem_to_hbm [thread:$0]  %s2599, 128, %s9, [#allocation4]
    $region73: #{tpu_custom_call.1} parent=1 // pred_fallthru
      _
    // Predicated region
    $region74: #{tpu_custom_call.1} parent=1 // pred_check
      _
    $region75: #{tpu_custom_call.1} parent=1 // pred_check_branch
      %2603 = sbr.rel (0) target = $region77
    $region76: #{tpu_custom_call.1} parent=1 // pred_region
      %2604 = dma.done [#allocation4], 128
    $region77: #{tpu_custom_call.1} parent=1 // pred_fallthru
      _
    %2605 = vsyncpa [#allocation3], 1
    %2606 = vsyncpa [#allocation8], 1
    %2607 = vsyncpa [#allocation11], 1
    %2608 = vsyncpa [#allocation14], 1
    %2609 = vsyncpa [#allocation4], 1
    %2610 = vsyncpa [#allocation5], 1

</llo_original>
